<compile_context>
chip_gen: v7x
topology: tpu7x:2x2x1
jax: 0.10.0
libtpu: 0.0.40
codegen_flags: <defaults>
</compile_context>

<pallas_src>
import jax
import jax.numpy as jnp
from jax.experimental import pallas as pl
from jax.experimental.pallas import tpu as pltpu

LANE = 128  # lane width; classifier output is padded to a multiple of this


# ----------------------------------------------------------------------------
# Single fused kernel: conv+ReLU+pool -> input projection -> LSTM -> classifier
# One grid step per batch element ("parallel" -> 2 TensorCores on v7x).
# ----------------------------------------------------------------------------
def _fused_detector_call(x_slab, w_conv, b_conv, w_ih, w_hh, b_gates,
                         w_cls_p, b_cls_p, *, S, B, HW):
    """x_slab : (B*S*HW, C) bf16, rows in batch-major (b, s, hw) order
       w_conv : (C, F)   bf16   pointwise conv weight
       b_conv : (1, F)   f32
       w_ih   : (F, 4H)  bf16   input->gate weight  (PyTorch i,f,g,o order)
       w_hh   : (H, 4H)  f32    hidden->gate weight (f32: tiny, no bf16 drift)
       b_gates: (1, 4H)  f32    b_ih + b_hh
       w_cls_p: (H, NCP) bf16   classifier weight, lane-padded to NCP
       b_cls_p: (1, NCP) f32
       returns: (B, 1, NCP) f32 logits (caller slices to num_classes)"""
    C = x_slab.shape[1]
    F = w_conv.shape[1]
    Hs = w_hh.shape[0]
    NCP = w_cls_p.shape[1]

    def kernel(x_ref, wc_ref, bc_ref, wih_ref, whh_ref, bg_ref,
               wo_ref, bo_ref, out_ref):
        # ---- CNN stand-in: pointwise conv + ReLU + per-frame global avg pool
        # bf16 x bf16 -> f32 accumulate (native MXU path), no slab up-cast.
        h = jnp.dot(x_ref[...], wc_ref[...],
                    preferred_element_type=jnp.float32)          # (S*HW, F)
        h = jnp.maximum(h + bc_ref[...], 0.0)
        # adaptive_avg_pool2d((1,1)): one reshaped reduction over the HW rows
        # of every frame (HW is a multiple of 8 -> clean sublane split).
        pooled = jnp.mean(h.reshape(S, HW, F), axis=1)           # (S, F)

        # ---- LSTM input projection, hoisted out of the recurrence ----------
        pre_gates = (jnp.dot(pooled.astype(jnp.bfloat16), wih_ref[...],
                             preferred_element_type=jnp.float32)
                     + bg_ref[...])                              # (S, 4H)

        # ---- LSTM recurrence (PyTorch gate order i,f,g,o), one row per core
        # TODO(synk): switch to lax.fori_loop with (h, c) carry if S grows big.
        h_t = jnp.zeros((1, Hs), jnp.float32)
        c_t = jnp.zeros((1, Hs), jnp.float32)
        for t in range(S):
            gates = pre_gates[t:t + 1, :] + jnp.dot(
                h_t, whh_ref[...], preferred_element_type=jnp.float32)
            # Hs is a multiple of 128 -> each gate slice is whole lane-vregs.
            i_g = jax.nn.sigmoid(gates[:, 0 * Hs:1 * Hs])
            f_g = jax.nn.sigmoid(gates[:, 1 * Hs:2 * Hs])
            g_g = jnp.tanh(gates[:, 2 * Hs:3 * Hs])
            o_g = jax.nn.sigmoid(gates[:, 3 * Hs:4 * Hs])
            c_t = f_g * c_t + i_g * g_g
            h_t = o_g * jnp.tanh(c_t)

        # ---- classifier: lane-dense padded output row -----------------------
        logits = (jnp.dot(h_t.astype(jnp.bfloat16), wo_ref[...],
                          preferred_element_type=jnp.float32) + bo_ref[...])
        out_ref[...] = logits.reshape(1, 1, NCP)

    return pl.pallas_call(
        kernel,
        out_shape=jax.ShapeDtypeStruct((B, 1, NCP), jnp.float32),
        grid=(B,),
        in_specs=[
            pl.BlockSpec((S * HW, C), lambda b: (b, 0)),   # per-batch pixel slab
            pl.BlockSpec((C, F), lambda b: (0, 0)),
            pl.BlockSpec((1, F), lambda b: (0, 0)),
            pl.BlockSpec((F, 4 * Hs), lambda b: (0, 0)),
            pl.BlockSpec((Hs, 4 * Hs), lambda b: (0, 0)),
            pl.BlockSpec((1, 4 * Hs), lambda b: (0, 0)),
            pl.BlockSpec((Hs, NCP), lambda b: (0, 0)),
            pl.BlockSpec((1, NCP), lambda b: (0, 0)),
        ],
        out_specs=pl.BlockSpec((1, 1, NCP), lambda b: (b, 0, 0)),
        compiler_params=pltpu.CompilerParams(
            dimension_semantics=("parallel",)),
    )(x_slab, w_conv, b_conv, w_ih, w_hh, b_gates, w_cls_p, b_cls_p)


# ----------------------------------------------------------------------------
# Full forward: (B, S, C, H, W) -> (B, num_classes)
# ----------------------------------------------------------------------------
def detector_forward(x, params):
    B, S, C, H, W = x.shape
    HW = H * W

    # Channels-last pixel slab, batch-major frame order (b, s, hw).  The
    # transpose+reshape+cast fuses into one tiny XLA layout pass at these
    # shapes; at real resolutions deliver untransposed frame tiles via
    # BlockSpec instead (see TODO at top).
    x_slab = (jnp.transpose(x, (0, 1, 3, 4, 2))
              .reshape(B * S * HW, C).astype(jnp.bfloat16))

    w_conv = params["w_conv"].astype(jnp.bfloat16)                # (C, F)
    b_conv = params["b_conv"].astype(jnp.float32)                 # (1, F)
    w_ih = params["w_ih"].astype(jnp.bfloat16)                    # (F, 4H)
    w_hh = params["w_hh"].astype(jnp.float32)                     # (H, 4H)
    b_gates = params["b_lstm"].astype(jnp.float32)                # (1, 4H)

    w_cls = params["w_cls"].astype(jnp.float32)                   # (H, NC)
    b_cls = params["b_cls"].astype(jnp.float32)                   # (1, NC)
    Hs, NC = w_cls.shape
    NCP = ((NC + LANE - 1) // LANE) * LANE                        # lane-dense
    w_cls_p = jnp.pad(w_cls, ((0, 0), (0, NCP - NC))).astype(jnp.bfloat16)
    b_cls_p = jnp.pad(b_cls, ((0, 0), (0, NCP - NC)))

    logits_p = _fused_detector_call(x_slab, w_conv, b_conv, w_ih, w_hh,
                                    b_gates, w_cls_p, b_cls_p,
                                    S=S, B=B, HW=HW)
    return logits_p.reshape(B, NCP)[:, :NC]


detector_forward = jax.jit(detector_forward)


# ----------------------------------------------------------------------------
# Pure-JAX f32 reference (same simplified CNN) for correctness check
# ----------------------------------------------------------------------------
def reference_forward(x, params):
    B, S, C, H, W = x.shape
    xf = jnp.transpose(x, (0, 1, 3, 4, 2)).reshape(B * S, H * W, C).astype(jnp.float32)
    h = jnp.maximum(jnp.einsum("nhc,cf->nhf", xf, params["w_conv"]) + params["b_conv"], 0.0)
    feats = h.mean(axis=1).reshape(B, S, -1)                      # (B, S, F)

    Hs = params["w_hh"].shape[0]
    h_t = jnp.zeros((B, Hs), jnp.float32)
    c_t = jnp.zeros((B, Hs), jnp.float32)
    for t in range(S):
        gates = feats[:, t] @ params["w_ih"] + h_t @ params["w_hh"] + params["b_lstm"]
        i_g = jax.nn.sigmoid(gates[:, 0 * Hs:1 * Hs])
        f_g = jax.nn.sigmoid(gates[:, 1 * Hs:2 * Hs])
        g_g = jnp.tanh(gates[:, 2 * Hs:3 * Hs])
        o_g = jax.nn.sigmoid(gates[:, 3 * Hs:4 * Hs])
        c_t = f_g * c_t + i_g * g_g
        h_t = o_g * jnp.tanh(c_t)
    return h_t @ params["w_cls"] + params["b_cls"]


if __name__ == "__main__":
    # Small shapes consistent with the module's forward:
    #   batch=2, seq=4, C=3, H=W=8; cnn_out_features=128, hidden=128, classes=2
    # (hidden chosen as a multiple of 128 so LSTM gate slices are vreg-aligned)
    B, S, C, H, W = 2, 4, 3, 8, 8
    FEAT, HIDDEN, NUM_CLASSES = 128, 128, 2

    key = jax.random.PRNGKey(0)
    k_x, k_wc, k_bc, k_ih, k_hh, k_b1, k_b2, k_wcl, k_bcl = jax.random.split(key, 9)

    x = jax.random.normal(k_x, (B, S, C, H, W), dtype=jnp.float32)

    # Deterministic synthetic parameters (PyTorch shapes, transposed for the kernel)
    w_conv = 0.1 * jax.random.normal(k_wc, (C, FEAT), dtype=jnp.float32)
    b_conv = 0.1 * jax.random.normal(k_bc, (1, FEAT), dtype=jnp.float32)
    w_ih_pt = 0.1 * jax.random.normal(k_ih, (4 * HIDDEN, FEAT), dtype=jnp.float32)
    w_hh_pt = 0.1 * jax.random.normal(k_hh, (4 * HIDDEN, HIDDEN), dtype=jnp.float32)
    b_ih = 0.1 * jax.random.normal(k_b1, (4 * HIDDEN,), dtype=jnp.float32)
    b_hh = 0.1 * jax.random.normal(k_b2, (4 * HIDDEN,), dtype=jnp.float32)
    w_cls_pt = 0.1 * jax.random.normal(k_wcl, (NUM_CLASSES, HIDDEN), dtype=jnp.float32)
    b_cls = 0.1 * jax.random.normal(k_bcl, (NUM_CLASSES,), dtype=jnp.float32)

    params = {
        "w_conv": w_conv,
        "b_conv": b_conv,
        "w_ih": w_ih_pt.T,                     # (F, 4H)
        "w_hh": w_hh_pt.T,                     # (H, 4H)
        "b_lstm": (b_ih + b_hh)[None, :],      # (1, 4H)
        "w_cls": w_cls_pt.T,                   # (H, NC)
        "b_cls": b_cls[None, :],               # (1, NC)
    }

    out = jax.block_until_ready(detector_forward(x, params))
    ref = reference_forward(x, params)

    assert out.shape == (B, NUM_CLASSES), out.shape
    # kernel uses bf16 matmul operands (f32 accumulation); reference is pure f32
    assert jnp.allclose(out, ref, atol=2e-2, rtol=2e-2), (out, ref)

    print("KERNEL_OK")
</pallas_src>

<mosaic_0001>
module attributes {stable_mosaic.version = 11 : i64} {
  func.func @kernel(%arg0: i32, %arg1: memref<256x3xbf16, #tpu.memory_space<vmem>>, %arg2: memref<3x128xbf16, #tpu.memory_space<vmem>>, %arg3: memref<1x128xf32, #tpu.memory_space<vmem>>, %arg4: memref<128x512xbf16, #tpu.memory_space<vmem>>, %arg5: memref<128x512xf32, #tpu.memory_space<vmem>>, %arg6: memref<1x512xf32, #tpu.memory_space<vmem>>, %arg7: memref<128x128xbf16, #tpu.memory_space<vmem>>, %arg8: memref<1x128xf32, #tpu.memory_space<vmem>>, %arg9: memref<1x1x128xf32, #tpu.memory_space<vmem>>) attributes {dimension_semantics = [#tpu.dimension_semantics<parallel>], iteration_bounds = array<i64: 2>, scalar_prefetch = 0 : i64, scratch_operands = 0 : i64, tpu.core_type = #tpu.core_type<tc>, window_params = [{transform_indices = @transform_0, window_bounds = array<i64: 256, 3>}, {pipeline_mode = #tpu.pipeline_mode<synchronous>, transform_indices = @transform_1, window_bounds = array<i64: 3, 128>}, {pipeline_mode = #tpu.pipeline_mode<synchronous>, transform_indices = @transform_2, window_bounds = array<i64: 1, 128>}, {pipeline_mode = #tpu.pipeline_mode<synchronous>, transform_indices = @transform_3, window_bounds = array<i64: 128, 512>}, {pipeline_mode = #tpu.pipeline_mode<synchronous>, transform_indices = @transform_4, window_bounds = array<i64: 128, 512>}, {pipeline_mode = #tpu.pipeline_mode<synchronous>, transform_indices = @transform_5, window_bounds = array<i64: 1, 512>}, {pipeline_mode = #tpu.pipeline_mode<synchronous>, transform_indices = @transform_6, window_bounds = array<i64: 128, 128>}, {pipeline_mode = #tpu.pipeline_mode<synchronous>, transform_indices = @transform_7, window_bounds = array<i64: 1, 128>}, {transform_indices = @transform_8, window_bounds = array<i64: 1, 1, 128>}]} {
    %c0 = arith.constant 0 : index
    %c0_0 = arith.constant 0 : index
    %0 = vector.load %arg1[%c0, %c0_0] : memref<256x3xbf16, #tpu.memory_space<vmem>>, vector<256x3xbf16>
    %c0_1 = arith.constant 0 : index
    %c0_2 = arith.constant 0 : index
    %1 = vector.load %arg2[%c0_1, %c0_2] : memref<3x128xbf16, #tpu.memory_space<vmem>>, vector<3x128xbf16>
    %cst = arith.constant dense<0.000000e+00> : vector<256x128xf32>
    %2 = tpu.matmul %0, %1, %cst {dimension_numbers = #tpu.dot_dimension_numbers<[1], [0], [0], [1], [0, 0, 1, 1], [], []>} : vector<256x3xbf16>, vector<3x128xbf16>, vector<256x128xf32> -> vector<256x128xf32>
    %c0_3 = arith.constant 0 : index
    %c0_4 = arith.constant 0 : index
    %3 = vector.load %arg3[%c0_3, %c0_4] : memref<1x128xf32, #tpu.memory_space<vmem>>, vector<1x128xf32>
    %4 = vector.broadcast %3 : vector<1x128xf32> to vector<256x128xf32>
    %5 = arith.addf %2, %4 : vector<256x128xf32>
    %cst_5 = arith.constant 0.000000e+00 : f32
    %6 = vector.broadcast %cst_5 : f32 to vector<256x128xf32>
    %7 = arith.maximumf %5, %6 : vector<256x128xf32>
    %8 = vector.shape_cast %7 : vector<256x128xf32> to vector<4x64x128xf32>
    %cst_6 = arith.constant dense<0.000000e+00> : vector<4x128xf32>
    %9 = vector.multi_reduction <add>, %8, %cst_6 [1] : vector<4x64x128xf32> to vector<4x128xf32>
    %cst_7 = arith.constant 6.400000e+01 : f32
    %10 = vector.broadcast %cst_7 : f32 to vector<4x128xf32>
    %11 = arith.divf %9, %10 : vector<4x128xf32>
    %12 = arith.truncf %11 : vector<4x128xf32> to vector<4x128xbf16>
    %c0_8 = arith.constant 0 : index
    %c0_9 = arith.constant 0 : index
    %13 = vector.load %arg4[%c0_8, %c0_9] : memref<128x512xbf16, #tpu.memory_space<vmem>>, vector<128x512xbf16>
    %cst_10 = arith.constant dense<0.000000e+00> : vector<4x512xf32>
    %14 = tpu.matmul %12, %13, %cst_10 {dimension_numbers = #tpu.dot_dimension_numbers<[1], [0], [0], [1], [0, 0, 1, 1], [], []>} : vector<4x128xbf16>, vector<128x512xbf16>, vector<4x512xf32> -> vector<4x512xf32>
    %c0_11 = arith.constant 0 : index
    %c0_12 = arith.constant 0 : index
    %15 = vector.load %arg6[%c0_11, %c0_12] : memref<1x512xf32, #tpu.memory_space<vmem>>, vector<1x512xf32>
    %16 = vector.broadcast %15 : vector<1x512xf32> to vector<4x512xf32>
    %17 = arith.addf %14, %16 : vector<4x512xf32>
    %cst_13 = arith.constant 0.000000e+00 : f32
    %18 = vector.broadcast %cst_13 : f32 to vector<1x128xf32>
    %cst_14 = arith.constant 0.000000e+00 : f32
    %19 = vector.broadcast %cst_14 : f32 to vector<1x128xf32>
    %20 = vector.extract_strided_slice %17 {offsets = [0, 0], sizes = [1, 512], strides = [1, 1]} : vector<4x512xf32> to vector<1x512xf32>
    %c0_15 = arith.constant 0 : index
    %c0_16 = arith.constant 0 : index
    %21 = vector.load %arg5[%c0_15, %c0_16] : memref<128x512xf32, #tpu.memory_space<vmem>>, vector<128x512xf32>
    %cst_17 = arith.constant dense<0.000000e+00> : vector<1x512xf32>
    %22 = tpu.matmul %18, %21, %cst_17 {dimension_numbers = #tpu.dot_dimension_numbers<[1], [0], [0], [1], [0, 0, 1, 1], [], []>} : vector<1x128xf32>, vector<128x512xf32>, vector<1x512xf32> -> vector<1x512xf32>
    %23 = arith.addf %20, %22 : vector<1x512xf32>
    %24 = vector.extract_strided_slice %23 {offsets = [0, 0], sizes = [1, 128], strides = [1, 1]} : vector<1x512xf32> to vector<1x128xf32>
    %25 = arith.negf %24 : vector<1x128xf32>
    %26 = math.exp %25 : vector<1x128xf32>
    %cst_18 = arith.constant 1.000000e+00 : f32
    %27 = vector.broadcast %cst_18 : f32 to vector<1x128xf32>
    %28 = arith.addf %27, %26 : vector<1x128xf32>
    %29 = arith.divf %27, %28 : vector<1x128xf32>
    %30 = vector.extract_strided_slice %23 {offsets = [0, 128], sizes = [1, 128], strides = [1, 1]} : vector<1x512xf32> to vector<1x128xf32>
    %31 = arith.negf %30 : vector<1x128xf32>
    %32 = math.exp %31 : vector<1x128xf32>
    %cst_19 = arith.constant 1.000000e+00 : f32
    %33 = vector.broadcast %cst_19 : f32 to vector<1x128xf32>
    %34 = arith.addf %33, %32 : vector<1x128xf32>
    %35 = arith.divf %33, %34 : vector<1x128xf32>
    %36 = vector.extract_strided_slice %23 {offsets = [0, 256], sizes = [1, 128], strides = [1, 1]} : vector<1x512xf32> to vector<1x128xf32>
    %37 = math.tanh %36 : vector<1x128xf32>
    %38 = vector.extract_strided_slice %23 {offsets = [0, 384], sizes = [1, 128], strides = [1, 1]} : vector<1x512xf32> to vector<1x128xf32>
    %39 = arith.negf %38 : vector<1x128xf32>
    %40 = math.exp %39 : vector<1x128xf32>
    %cst_20 = arith.constant 1.000000e+00 : f32
    %41 = vector.broadcast %cst_20 : f32 to vector<1x128xf32>
    %42 = arith.addf %41, %40 : vector<1x128xf32>
    %43 = arith.divf %41, %42 : vector<1x128xf32>
    %44 = arith.mulf %35, %19 : vector<1x128xf32>
    %45 = arith.mulf %29, %37 : vector<1x128xf32>
    %46 = arith.addf %44, %45 : vector<1x128xf32>
    %47 = math.tanh %46 : vector<1x128xf32>
    %48 = arith.mulf %43, %47 : vector<1x128xf32>
    %49 = vector.extract_strided_slice %17 {offsets = [1, 0], sizes = [1, 512], strides = [1, 1]} : vector<4x512xf32> to vector<1x512xf32>
    %c0_21 = arith.constant 0 : index
    %c0_22 = arith.constant 0 : index
    %50 = vector.load %arg5[%c0_21, %c0_22] : memref<128x512xf32, #tpu.memory_space<vmem>>, vector<128x512xf32>
    %cst_23 = arith.constant dense<0.000000e+00> : vector<1x512xf32>
    %51 = tpu.matmul %48, %50, %cst_23 {dimension_numbers = #tpu.dot_dimension_numbers<[1], [0], [0], [1], [0, 0, 1, 1], [], []>} : vector<1x128xf32>, vector<128x512xf32>, vector<1x512xf32> -> vector<1x512xf32>
    %52 = arith.addf %49, %51 : vector<1x512xf32>
    %53 = vector.extract_strided_slice %52 {offsets = [0, 0], sizes = [1, 128], strides = [1, 1]} : vector<1x512xf32> to vector<1x128xf32>
    %54 = arith.negf %53 : vector<1x128xf32>
    %55 = math.exp %54 : vector<1x128xf32>
    %cst_24 = arith.constant 1.000000e+00 : f32
    %56 = vector.broadcast %cst_24 : f32 to vector<1x128xf32>
    %57 = arith.addf %56, %55 : vector<1x128xf32>
    %58 = arith.divf %56, %57 : vector<1x128xf32>
    %59 = vector.extract_strided_slice %52 {offsets = [0, 128], sizes = [1, 128], strides = [1, 1]} : vector<1x512xf32> to vector<1x128xf32>
    %60 = arith.negf %59 : vector<1x128xf32>
    %61 = math.exp %60 : vector<1x128xf32>
    %cst_25 = arith.constant 1.000000e+00 : f32
    %62 = vector.broadcast %cst_25 : f32 to vector<1x128xf32>
    %63 = arith.addf %62, %61 : vector<1x128xf32>
    %64 = arith.divf %62, %63 : vector<1x128xf32>
    %65 = vector.extract_strided_slice %52 {offsets = [0, 256], sizes = [1, 128], strides = [1, 1]} : vector<1x512xf32> to vector<1x128xf32>
    %66 = math.tanh %65 : vector<1x128xf32>
    %67 = vector.extract_strided_slice %52 {offsets = [0, 384], sizes = [1, 128], strides = [1, 1]} : vector<1x512xf32> to vector<1x128xf32>
    %68 = arith.negf %67 : vector<1x128xf32>
    %69 = math.exp %68 : vector<1x128xf32>
    %cst_26 = arith.constant 1.000000e+00 : f32
    %70 = vector.broadcast %cst_26 : f32 to vector<1x128xf32>
    %71 = arith.addf %70, %69 : vector<1x128xf32>
    %72 = arith.divf %70, %71 : vector<1x128xf32>
    %73 = arith.mulf %64, %46 : vector<1x128xf32>
    %74 = arith.mulf %58, %66 : vector<1x128xf32>
    %75 = arith.addf %73, %74 : vector<1x128xf32>
    %76 = math.tanh %75 : vector<1x128xf32>
    %77 = arith.mulf %72, %76 : vector<1x128xf32>
    %78 = vector.extract_strided_slice %17 {offsets = [2, 0], sizes = [1, 512], strides = [1, 1]} : vector<4x512xf32> to vector<1x512xf32>
    %c0_27 = arith.constant 0 : index
    %c0_28 = arith.constant 0 : index
    %79 = vector.load %arg5[%c0_27, %c0_28] : memref<128x512xf32, #tpu.memory_space<vmem>>, vector<128x512xf32>
    %cst_29 = arith.constant dense<0.000000e+00> : vector<1x512xf32>
    %80 = tpu.matmul %77, %79, %cst_29 {dimension_numbers = #tpu.dot_dimension_numbers<[1], [0], [0], [1], [0, 0, 1, 1], [], []>} : vector<1x128xf32>, vector<128x512xf32>, vector<1x512xf32> -> vector<1x512xf32>
    %81 = arith.addf %78, %80 : vector<1x512xf32>
    %82 = vector.extract_strided_slice %81 {offsets = [0, 0], sizes = [1, 128], strides = [1, 1]} : vector<1x512xf32> to vector<1x128xf32>
    %83 = arith.negf %82 : vector<1x128xf32>
    %84 = math.exp %83 : vector<1x128xf32>
    %cst_30 = arith.constant 1.000000e+00 : f32
    %85 = vector.broadcast %cst_30 : f32 to vector<1x128xf32>
    %86 = arith.addf %85, %84 : vector<1x128xf32>
    %87 = arith.divf %85, %86 : vector<1x128xf32>
    %88 = vector.extract_strided_slice %81 {offsets = [0, 128], sizes = [1, 128], strides = [1, 1]} : vector<1x512xf32> to vector<1x128xf32>
    %89 = arith.negf %88 : vector<1x128xf32>
    %90 = math.exp %89 : vector<1x128xf32>
    %cst_31 = arith.constant 1.000000e+00 : f32
    %91 = vector.broadcast %cst_31 : f32 to vector<1x128xf32>
    %92 = arith.addf %91, %90 : vector<1x128xf32>
    %93 = arith.divf %91, %92 : vector<1x128xf32>
    %94 = vector.extract_strided_slice %81 {offsets = [0, 256], sizes = [1, 128], strides = [1, 1]} : vector<1x512xf32> to vector<1x128xf32>
    %95 = math.tanh %94 : vector<1x128xf32>
    %96 = vector.extract_strided_slice %81 {offsets = [0, 384], sizes = [1, 128], strides = [1, 1]} : vector<1x512xf32> to vector<1x128xf32>
    %97 = arith.negf %96 : vector<1x128xf32>
    %98 = math.exp %97 : vector<1x128xf32>
    %cst_32 = arith.constant 1.000000e+00 : f32
    %99 = vector.broadcast %cst_32 : f32 to vector<1x128xf32>
    %100 = arith.addf %99, %98 : vector<1x128xf32>
    %101 = arith.divf %99, %100 : vector<1x128xf32>
    %102 = arith.mulf %93, %75 : vector<1x128xf32>
    %103 = arith.mulf %87, %95 : vector<1x128xf32>
    %104 = arith.addf %102, %103 : vector<1x128xf32>
    %105 = math.tanh %104 : vector<1x128xf32>
    %106 = arith.mulf %101, %105 : vector<1x128xf32>
    %107 = vector.extract_strided_slice %17 {offsets = [3, 0], sizes = [1, 512], strides = [1, 1]} : vector<4x512xf32> to vector<1x512xf32>
    %c0_33 = arith.constant 0 : index
    %c0_34 = arith.constant 0 : index
    %108 = vector.load %arg5[%c0_33, %c0_34] : memref<128x512xf32, #tpu.memory_space<vmem>>, vector<128x512xf32>
    %cst_35 = arith.constant dense<0.000000e+00> : vector<1x512xf32>
    %109 = tpu.matmul %106, %108, %cst_35 {dimension_numbers = #tpu.dot_dimension_numbers<[1], [0], [0], [1], [0, 0, 1, 1], [], []>} : vector<1x128xf32>, vector<128x512xf32>, vector<1x512xf32> -> vector<1x512xf32>
    %110 = arith.addf %107, %109 : vector<1x512xf32>
    %111 = vector.extract_strided_slice %110 {offsets = [0, 0], sizes = [1, 128], strides = [1, 1]} : vector<1x512xf32> to vector<1x128xf32>
    %112 = arith.negf %111 : vector<1x128xf32>
    %113 = math.exp %112 : vector<1x128xf32>
    %cst_36 = arith.constant 1.000000e+00 : f32
    %114 = vector.broadcast %cst_36 : f32 to vector<1x128xf32>
    %115 = arith.addf %114, %113 : vector<1x128xf32>
    %116 = arith.divf %114, %115 : vector<1x128xf32>
    %117 = vector.extract_strided_slice %110 {offsets = [0, 128], sizes = [1, 128], strides = [1, 1]} : vector<1x512xf32> to vector<1x128xf32>
    %118 = arith.negf %117 : vector<1x128xf32>
    %119 = math.exp %118 : vector<1x128xf32>
    %cst_37 = arith.constant 1.000000e+00 : f32
    %120 = vector.broadcast %cst_37 : f32 to vector<1x128xf32>
    %121 = arith.addf %120, %119 : vector<1x128xf32>
    %122 = arith.divf %120, %121 : vector<1x128xf32>
    %123 = vector.extract_strided_slice %110 {offsets = [0, 256], sizes = [1, 128], strides = [1, 1]} : vector<1x512xf32> to vector<1x128xf32>
    %124 = math.tanh %123 : vector<1x128xf32>
    %125 = vector.extract_strided_slice %110 {offsets = [0, 384], sizes = [1, 128], strides = [1, 1]} : vector<1x512xf32> to vector<1x128xf32>
    %126 = arith.negf %125 : vector<1x128xf32>
    %127 = math.exp %126 : vector<1x128xf32>
    %cst_38 = arith.constant 1.000000e+00 : f32
    %128 = vector.broadcast %cst_38 : f32 to vector<1x128xf32>
    %129 = arith.addf %128, %127 : vector<1x128xf32>
    %130 = arith.divf %128, %129 : vector<1x128xf32>
    %131 = arith.mulf %122, %104 : vector<1x128xf32>
    %132 = arith.mulf %116, %124 : vector<1x128xf32>
    %133 = arith.addf %131, %132 : vector<1x128xf32>
    %134 = math.tanh %133 : vector<1x128xf32>
    %135 = arith.mulf %130, %134 : vector<1x128xf32>
    %136 = arith.truncf %135 : vector<1x128xf32> to vector<1x128xbf16>
    %c0_39 = arith.constant 0 : index
    %c0_40 = arith.constant 0 : index
    %137 = vector.load %arg7[%c0_39, %c0_40] : memref<128x128xbf16, #tpu.memory_space<vmem>>, vector<128x128xbf16>
    %cst_41 = arith.constant dense<0.000000e+00> : vector<1x128xf32>
    %138 = tpu.matmul %136, %137, %cst_41 {dimension_numbers = #tpu.dot_dimension_numbers<[1], [0], [0], [1], [0, 0, 1, 1], [], []>} : vector<1x128xbf16>, vector<128x128xbf16>, vector<1x128xf32> -> vector<1x128xf32>
    %c0_42 = arith.constant 0 : index
    %c0_43 = arith.constant 0 : index
    %139 = vector.load %arg8[%c0_42, %c0_43] : memref<1x128xf32, #tpu.memory_space<vmem>>, vector<1x128xf32>
    %140 = arith.addf %138, %139 : vector<1x128xf32>
    %141 = vector.shape_cast %140 : vector<1x128xf32> to vector<1x1x128xf32>
    %c0_44 = arith.constant 0 : index
    %c0_45 = arith.constant 0 : index
    %c0_46 = arith.constant 0 : index
    %142 = vector.load %arg9[%c0_44, %c0_45, %c0_46] : memref<1x1x128xf32, #tpu.memory_space<vmem>>, vector<1x1x128xf32>
    tpu.vector_store %arg9[%c0_44, %c0_45, %c0_46], %141 {strides = array<i32>} : memref<1x1x128xf32, #tpu.memory_space<vmem>>, vector<1x1x128xf32>,
    return
  }
  func.func @transform_0(%arg0: i32) -> (i32, i32) {
    %c0_i32 = arith.constant 0 : i32
    %c0_i32_0 = arith.constant 0 : i32
    return %arg0, %c0_i32 : i32, i32
  }
  func.func @transform_1(%arg0: i32) -> (i32, i32) {
    %c0_i32 = arith.constant 0 : i32
    %c0_i32_0 = arith.constant 0 : i32
    %c0_i32_1 = arith.constant 0 : i32
    return %c0_i32, %c0_i32_0 : i32, i32
  }
  func.func @transform_2(%arg0: i32) -> (i32, i32) {
    %c0_i32 = arith.constant 0 : i32
    %c0_i32_0 = arith.constant 0 : i32
    %c0_i32_1 = arith.constant 0 : i32
    return %c0_i32, %c0_i32_0 : i32, i32
  }
  func.func @transform_3(%arg0: i32) -> (i32, i32) {
    %c0_i32 = arith.constant 0 : i32
    %c0_i32_0 = arith.constant 0 : i32
    %c0_i32_1 = arith.constant 0 : i32
    return %c0_i32, %c0_i32_0 : i32, i32
  }
  func.func @transform_4(%arg0: i32) -> (i32, i32) {
    %c0_i32 = arith.constant 0 : i32
    %c0_i32_0 = arith.constant 0 : i32
    %c0_i32_1 = arith.constant 0 : i32
    return %c0_i32, %c0_i32_0 : i32, i32
  }
  func.func @transform_5(%arg0: i32) -> (i32, i32) {
    %c0_i32 = arith.constant 0 : i32
    %c0_i32_0 = arith.constant 0 : i32
    %c0_i32_1 = arith.constant 0 : i32
    return %c0_i32, %c0_i32_0 : i32, i32
  }
  func.func @transform_6(%arg0: i32) -> (i32, i32) {
    %c0_i32 = arith.constant 0 : i32
    %c0_i32_0 = arith.constant 0 : i32
    %c0_i32_1 = arith.constant 0 : i32
    return %c0_i32, %c0_i32_0 : i32, i32
  }
  func.func @transform_7(%arg0: i32) -> (i32, i32) {
    %c0_i32 = arith.constant 0 : i32
    %c0_i32_0 = arith.constant 0 : i32
    %c0_i32_1 = arith.constant 0 : i32
    return %c0_i32, %c0_i32_0 : i32, i32
  }
  func.func @transform_8(%arg0: i32) -> (i32, i32, i32) {
    %c0_i32 = arith.constant 0 : i32
    %c0_i32_0 = arith.constant 0 : i32
    %c0_i32_1 = arith.constant 0 : i32
    return %arg0, %c0_i32, %c0_i32_0 : i32, i32, i32
  }
}

</mosaic_0001>

<llo_original>
// kernel: detector_forward.1
$region0: #{detector_forward.1}
  #allocation0 [shape = 'u32[]', space=smem, size = 0x4, offset = 0x4, fixed_abs, tag = 'smem constant byte address 0x4 - core index']
  #allocation1 [shape = 'u32[144,128]{1,0:T(1,128)}', space=vmem, size = 0x12000, scoped, tag = 'internal scratch']
  %s0 = inlined_call_operand.vmem [shape: bf16[512,3], index: 0, kind: input, shape index: {}]
  %s1 = inlined_call_operand.vmem [shape: bf16[3,128], index: 1, kind: input, shape index: {}]
  %s2 = inlined_call_operand.vmem [shape: f32[1,128], index: 2, kind: input, shape index: {}]
  %s3 = inlined_call_operand.vmem [shape: bf16[128,512], index: 3, kind: input, shape index: {}]
  %s4 = inlined_call_operand.vmem [shape: f32[128,512], index: 4, kind: input, shape index: {}]
  %s5 = inlined_call_operand.vmem [shape: f32[1,512], index: 5, kind: input, shape index: {}]
  %s6 = inlined_call_operand.vmem [shape: bf16[128,128], index: 6, kind: input, shape index: {}]
  %s7 = inlined_call_operand.vmem [shape: f32[1,128], index: 7, kind: input, shape index: {}]
  %s8 = inlined_call_operand.hbm [shape: f32[2,1,128], index: 8, kind: output, shape index: {}]
  %s9 = sld [smem:[#allocation0]]
  $region65: #{detector_forward.1} parent=0
    _
  %s11 = ssub.s32 1, %s9
  %s12 = scalar_select 0, %s11, %s9
  $region1: #{detector_forward.1} parent=0
    #allocation2 [shape = 'u8[1024]{0}', space=vmem, size = 0x400, scoped, tag = 'output window, operand 0']
    #allocation3 [shape = 's32[2]{0}', space=sflag, size = 0x8, scoped, tag = 'scoped memory for detector_forward.1']
    %13 = vsyncpa [#allocation3], 0
    %s14 = scalar_lea.sflag [#allocation3], 1
    %15 = vsyncpa %s14, 0
    loop: start=0, step=1, limit=4
    $region2: #{detector_forward.1} parent=1 // loop_pre_header
      _
    $region3: #{detector_forward.1} parent=1 // loop_header
      %s17 = sphi 0, %s21
      %p18 = scmp.ge.s32.totalorder %s17, 4
      %s27 = sphi 0, %s29
      %s30 = sphi 0, %s27
      %s31 = sphi 0, %s30
      %s47 = sphi 0, %s31
      %s51 = sphi 0, %s51
      %s53 = sphi 0, %s51
      %s54 = sphi 0, %s53
      %s68 = sphi 0, %s54
      %s72 = sphi 0, %s72
      %s74 = sphi 0, %s72
      %s75 = sphi 0, %s74
      %s89 = sphi 0, %s75
      %s93 = sphi 0, %s93
      %s95 = sphi 0, %s93
      %s96 = sphi 0, %s95
      %s110 = sphi 0, %s96
      %s114 = sphi 0, %s114
      %s116 = sphi 0, %s114
      %s117 = sphi 0, %s116
      %s131 = sphi 0, %s117
      %s135 = sphi 0, %s135
      %s137 = sphi 0, %s135
      %s138 = sphi 0, %s137
      %s152 = sphi 0, %s138
      %s156 = sphi 0, %s156
      %s158 = sphi 0, %s156
      %s159 = sphi 0, %s158
      %s173 = sphi 0, %s159
      %s177 = sphi 0, %s177
      %s179 = sphi 0, %s177
      %s180 = sphi 0, %s179
      %s194 = sphi 0, %s180
      %s200 = sphi 0, %s202
      %s203 = sphi 0, %s200
      %s204 = sphi 0, %s203
      %s220 = sphi 0, %s204
    $region4: #{detector_forward.1} parent=1 // loop_header_branch
      %20 = sbr.rel (%p18) target = $region8
    $region5: #{detector_forward.1} parent=1 // loop_body
      %s22 = ssub.s32 %s17, 1
      %s23 = ssub.s32 %s17, 2
      %s24 = sadd.s32 %s17, 1
      %s25 = ssub.s32 %s17, %s24
      %p26 = scmp.eq.s32.totalorder %s25, 0
      %s28 = sadd.s32 %s27, 1
      %s29 = scalar_select %p26, %s27, %s28
      %p32 = pneg %p26
      %p33 = scmp.eq.s32.totalorder %s17, 1
      %p34 = por %p32, %p33
      %p35 = scmp.ne.s32.totalorder %s27, %s30
      %p36 = scmp.eq.s32.totalorder %s17, 0
      %p37 = por %p35, %p36
      %p38 = scmp.ne.s32.totalorder %s27, %s30
      %p39 = scmp.eq.s32.totalorder %s22, 1
      %p40 = por %p38, %p39
      %p41 = scmp.ne.s32.totalorder %s30, %s31
      %p42 = scmp.eq.s32.totalorder %s22, 0
      %p43 = por %p41, %p42
      %p44 = scmp.ne.s32.totalorder %s30, %s31
      %p45 = scmp.eq.s32.totalorder %s23, 1
      %p46 = por %p44, %p45
      %p48 = scmp.ne.s32.totalorder %s31, %s47
      %p49 = scmp.eq.s32.totalorder %s23, 0
      %p50 = por %p48, %p49
      %s52 = sadd.s32 %s51, 1
      %p55 = scmp.eq.s32.totalorder %s17, 1
      %p56 = scmp.ne.s32.totalorder %s51, %s53
      %p57 = scmp.eq.s32.totalorder %s17, 0
      %p58 = por %p56, %p57
      %p59 = scmp.ne.s32.totalorder %s51, %s53
      %p60 = scmp.eq.s32.totalorder %s22, 1
      %p61 = por %p59, %p60
      %p62 = scmp.ne.s32.totalorder %s53, %s54
      %p63 = scmp.eq.s32.totalorder %s22, 0
      %p64 = por %p62, %p63
      %p65 = scmp.ne.s32.totalorder %s53, %s54
      %p66 = scmp.eq.s32.totalorder %s23, 1
      %p67 = por %p65, %p66
      %p69 = scmp.ne.s32.totalorder %s54, %s68
      %p70 = scmp.eq.s32.totalorder %s23, 0
      %p71 = por %p69, %p70
      %s73 = sadd.s32 %s72, 1
      %p76 = scmp.eq.s32.totalorder %s17, 1
      %p77 = scmp.ne.s32.totalorder %s72, %s74
      %p78 = scmp.eq.s32.totalorder %s17, 0
      %p79 = por %p77, %p78
      %p80 = scmp.ne.s32.totalorder %s72, %s74
      %p81 = scmp.eq.s32.totalorder %s22, 1
      %p82 = por %p80, %p81
      %p83 = scmp.ne.s32.totalorder %s74, %s75
      %p84 = scmp.eq.s32.totalorder %s22, 0
      %p85 = por %p83, %p84
      %p86 = scmp.ne.s32.totalorder %s74, %s75
      %p87 = scmp.eq.s32.totalorder %s23, 1
      %p88 = por %p86, %p87
      %p90 = scmp.ne.s32.totalorder %s75, %s89
      %p91 = scmp.eq.s32.totalorder %s23, 0
      %p92 = por %p90, %p91
      %s94 = sadd.s32 %s93, 1
      %p97 = scmp.eq.s32.totalorder %s17, 1
      %p98 = scmp.ne.s32.totalorder %s93, %s95
      %p99 = scmp.eq.s32.totalorder %s17, 0
      %p100 = por %p98, %p99
      %p101 = scmp.ne.s32.totalorder %s93, %s95
      %p102 = scmp.eq.s32.totalorder %s22, 1
      %p103 = por %p101, %p102
      %p104 = scmp.ne.s32.totalorder %s95, %s96
      %p105 = scmp.eq.s32.totalorder %s22, 0
      %p106 = por %p104, %p105
      %p107 = scmp.ne.s32.totalorder %s95, %s96
      %p108 = scmp.eq.s32.totalorder %s23, 1
      %p109 = por %p107, %p108
      %p111 = scmp.ne.s32.totalorder %s96, %s110
      %p112 = scmp.eq.s32.totalorder %s23, 0
      %p113 = por %p111, %p112
      %s115 = sadd.s32 %s114, 1
      %p118 = scmp.eq.s32.totalorder %s17, 1
      %p119 = scmp.ne.s32.totalorder %s114, %s116
      %p120 = scmp.eq.s32.totalorder %s17, 0
      %p121 = por %p119, %p120
      %p122 = scmp.ne.s32.totalorder %s114, %s116
      %p123 = scmp.eq.s32.totalorder %s22, 1
      %p124 = por %p122, %p123
      %p125 = scmp.ne.s32.totalorder %s116, %s117
      %p126 = scmp.eq.s32.totalorder %s22, 0
      %p127 = por %p125, %p126
      %p128 = scmp.ne.s32.totalorder %s116, %s117
      %p129 = scmp.eq.s32.totalorder %s23, 1
      %p130 = por %p128, %p129
      %p132 = scmp.ne.s32.totalorder %s117, %s131
      %p133 = scmp.eq.s32.totalorder %s23, 0
      %p134 = por %p132, %p133
      %s136 = sadd.s32 %s135, 1
      %p139 = scmp.eq.s32.totalorder %s17, 1
      %p140 = scmp.ne.s32.totalorder %s135, %s137
      %p141 = scmp.eq.s32.totalorder %s17, 0
      %p142 = por %p140, %p141
      %p143 = scmp.ne.s32.totalorder %s135, %s137
      %p144 = scmp.eq.s32.totalorder %s22, 1
      %p145 = por %p143, %p144
      %p146 = scmp.ne.s32.totalorder %s137, %s138
      %p147 = scmp.eq.s32.totalorder %s22, 0
      %p148 = por %p146, %p147
      %p149 = scmp.ne.s32.totalorder %s137, %s138
      %p150 = scmp.eq.s32.totalorder %s23, 1
      %p151 = por %p149, %p150
      %p153 = scmp.ne.s32.totalorder %s138, %s152
      %p154 = scmp.eq.s32.totalorder %s23, 0
      %p155 = por %p153, %p154
      %s157 = sadd.s32 %s156, 1
      %p160 = scmp.eq.s32.totalorder %s17, 1
      %p161 = scmp.ne.s32.totalorder %s156, %s158
      %p162 = scmp.eq.s32.totalorder %s17, 0
      %p163 = por %p161, %p162
      %p164 = scmp.ne.s32.totalorder %s156, %s158
      %p165 = scmp.eq.s32.totalorder %s22, 1
      %p166 = por %p164, %p165
      %p167 = scmp.ne.s32.totalorder %s158, %s159
      %p168 = scmp.eq.s32.totalorder %s22, 0
      %p169 = por %p167, %p168
      %p170 = scmp.ne.s32.totalorder %s158, %s159
      %p171 = scmp.eq.s32.totalorder %s23, 1
      %p172 = por %p170, %p171
      %p174 = scmp.ne.s32.totalorder %s159, %s173
      %p175 = scmp.eq.s32.totalorder %s23, 0
      %p176 = por %p174, %p175
      %s178 = sadd.s32 %s177, 1
      %p181 = scmp.eq.s32.totalorder %s17, 1
      %p182 = scmp.ne.s32.totalorder %s177, %s179
      %p183 = scmp.eq.s32.totalorder %s17, 0
      %p184 = por %p182, %p183
      %p185 = scmp.ne.s32.totalorder %s177, %s179
      %p186 = scmp.eq.s32.totalorder %s22, 1
      %p187 = por %p185, %p186
      %p188 = scmp.ne.s32.totalorder %s179, %s180
      %p189 = scmp.eq.s32.totalorder %s22, 0
      %p190 = por %p188, %p189
      %p191 = scmp.ne.s32.totalorder %s179, %s180
      %p192 = scmp.eq.s32.totalorder %s23, 1
      %p193 = por %p191, %p192
      %p195 = scmp.ne.s32.totalorder %s180, %s194
      %p196 = scmp.eq.s32.totalorder %s23, 0
      %p197 = por %p195, %p196
      %s198 = ssub.s32 %s17, %s24
      %p199 = scmp.eq.s32.totalorder %s198, 0
      %s201 = sadd.s32 %s200, 1
      %s202 = scalar_select %p199, %s200, %s201
      %p205 = pneg %p199
      %p206 = scmp.eq.s32.totalorder %s17, 1
      %p207 = por %p205, %p206
      %p208 = scmp.ne.s32.totalorder %s200, %s203
      %p209 = scmp.eq.s32.totalorder %s17, 0
      %p210 = por %p208, %p209
      %p211 = scmp.ne.s32.totalorder %s200, %s203
      %p212 = scmp.eq.s32.totalorder %s22, 1
      %p213 = por %p211, %p212
      %p214 = scmp.ne.s32.totalorder %s203, %s204
      %p215 = scmp.eq.s32.totalorder %s22, 0
      %p216 = por %p214, %p215
      %p217 = scmp.ne.s32.totalorder %s203, %s204
      %p218 = scmp.eq.s32.totalorder %s23, 1
      %p219 = por %p217, %p218
      %p221 = scmp.ne.s32.totalorder %s204, %s220
      %p222 = scmp.eq.s32.totalorder %s23, 0
      %p223 = por %p221, %p222
      %p224 = scmp.le.s32.totalorder 1, %s17
      %p225 = scmp.lt.s32.totalorder %s17, 3
      %p226 = pnand %p224, %p225
      %p227 = pneg %p226
      // Predicated region
      $region9: #{detector_forward.1} parent=5 // pred_check
        _
      $region10: #{detector_forward.1} parent=5 // pred_check_branch
        %229 = sbr.rel (%p226) target = $region12
      $region11: #{detector_forward.1} parent=5 // pred_region
        %s230 = ssub.s32 %s17, 1
        // Predicated region
        $region13: #{detector_forward.1} parent=11 // pred_check
          %p231 = pneg %p64
        $region14: #{detector_forward.1} parent=11 // pred_check_branch
          %233 = sbr.rel (%p231) target = $region16
        $region15: #{detector_forward.1} parent=11 // pred_region
          _
        $region16: #{detector_forward.1} parent=11 // pred_fallthru
          _
        // Predicated region
        $region17: #{detector_forward.1} parent=11 // pred_check
          %p234 = pneg %p85
        $region18: #{detector_forward.1} parent=11 // pred_check_branch
          %236 = sbr.rel (%p234) target = $region20
        $region19: #{detector_forward.1} parent=11 // pred_region
          _
        $region20: #{detector_forward.1} parent=11 // pred_fallthru
          _
        // Predicated region
        $region21: #{detector_forward.1} parent=11 // pred_check
          %p237 = pneg %p106
        $region22: #{detector_forward.1} parent=11 // pred_check_branch
          %239 = sbr.rel (%p237) target = $region24
        $region23: #{detector_forward.1} parent=11 // pred_region
          _
        $region24: #{detector_forward.1} parent=11 // pred_fallthru
          _
        // Predicated region
        $region25: #{detector_forward.1} parent=11 // pred_check
          %p240 = pneg %p127
        $region26: #{detector_forward.1} parent=11 // pred_check_branch
          %242 = sbr.rel (%p240) target = $region28
        $region27: #{detector_forward.1} parent=11 // pred_region
          _
        $region28: #{detector_forward.1} parent=11 // pred_fallthru
          _
        // Predicated region
        $region29: #{detector_forward.1} parent=11 // pred_check
          %p243 = pneg %p148
        $region30: #{detector_forward.1} parent=11 // pred_check_branch
          %245 = sbr.rel (%p243) target = $region32
        $region31: #{detector_forward.1} parent=11 // pred_region
          _
        $region32: #{detector_forward.1} parent=11 // pred_fallthru
          _
        // Predicated region
        $region33: #{detector_forward.1} parent=11 // pred_check
          %p246 = pneg %p169
        $region34: #{detector_forward.1} parent=11 // pred_check_branch
          %248 = sbr.rel (%p246) target = $region36
        $region35: #{detector_forward.1} parent=11 // pred_region
          _
        $region36: #{detector_forward.1} parent=11 // pred_fallthru
          _
        // Predicated region
        $region37: #{detector_forward.1} parent=11 // pred_check
          %p249 = pneg %p190
        $region38: #{detector_forward.1} parent=11 // pred_check_branch
          %251 = sbr.rel (%p249) target = $region40
        $region39: #{detector_forward.1} parent=11 // pred_region
          _
        $region40: #{detector_forward.1} parent=11 // pred_fallthru
          _
      $region12: #{detector_forward.1} parent=5 // pred_fallthru
        _
      %p252 = scmp.lt.s32.totalorder %s17, 2
      // Predicated region
      $region41: #{detector_forward.1} parent=5 // pred_check
        %p253 = pneg %p252
      $region42: #{detector_forward.1} parent=5 // pred_check_branch
        %255 = sbr.rel (%p253) target = $region44
      $region43: #{detector_forward.1} parent=5 // pred_region
        // Predicated region
        $region45: #{detector_forward.1} parent=43 // pred_check
          %p256 = pneg %p37
        $region46: #{detector_forward.1} parent=43 // pred_check_branch
          %258 = sbr.rel (%p256) target = $region48
        $region47: #{detector_forward.1} parent=43 // pred_region
          %s259 = smul.u32 32, %s17
          %p260 = scmp.lt.s32.totalorder %s259, 63
          %s261 = scalar_select %p260, %s259, 63
          %s262 = smul.addr %s261, 4
          %s263 = scalar_lea.vmem %s0, %s262
          %s264 = smul.u32 32, %s17
        $region48: #{detector_forward.1} parent=43 // pred_fallthru
          _
      $region44: #{detector_forward.1} parent=5 // pred_fallthru
        _
      %p265 = scmp.le.s32.totalorder 1, %s17
      %p266 = scmp.lt.s32.totalorder %s17, 3
      %p267 = pnand %p265, %p266
      %p268 = pneg %p267
      // Predicated region
      $region49: #{detector_forward.1} parent=5 // pred_check
        _
      $region50: #{detector_forward.1} parent=5 // pred_check_branch
        %270 = sbr.rel (%p267) target = $region52
      $region51: #{detector_forward.1} parent=5 // pred_region
        %s271 = ssub.s32 %s17, 1
        %s272 = smul.u32 32, %s22
        %p273 = scmp.lt.s32.totalorder %s272, 63
        %s274 = scalar_select %p273, %s272, 63
        %s275 = smul.addr %s274, 4
        %s276 = scalar_lea.vmem %s0, %s275
        %p277 = pneg %p43
        %p278 = pneg %p40
        %p279 = pneg %p64
        %p280 = pneg %p61
        %p281 = pneg %p85
        %p282 = pneg %p82
        %p283 = pneg %p106
        %p284 = pneg %p103
        %p285 = pneg %p127
        %p286 = pneg %p124
        %p287 = pneg %p148
        %p288 = pneg %p145
        %p289 = pneg %p169
        %p290 = pneg %p166
        %p291 = pneg %p190
        %p292 = pneg %p187
        %p293 = pneg %p216
        %p294 = pneg %p213
        %s295 = sand.u32 %s203, 1
        %s296 = scalar_lea.sflag [#allocation3], %s295
        %s297 = sand.u32 %s203, 1
        %s298 = scalar_lea.vmem [#allocation2], %s297
        %s299 = smul.u32 32, %s22
        %p300 = scmp.lt.s32.totalorder %s299, 63
        %s301 = scalar_select %p300, %s299, 63
        %s302 = smul.addr %s301, 4
        %s303 = scalar_lea.vmem %s0, %s302
        %s304 = smul.u32 32, %s22
        %v306 = vld [vmem:[%s303] sm:$0xf]
        %v307 = vld [vmem:[%s303 + $0x4] sm:$0xf]
        %v308 = vld [vmem:[%s303 + $0x8] sm:$0xf]
        %v309 = vld [vmem:[%s303 + $0xc] sm:$0xf]
        %v310 = vld [vmem:[%s303 + $0x10] sm:$0xf]
        %v311 = vld [vmem:[%s303 + $0x14] sm:$0xf]
        %v312 = vld [vmem:[%s303 + $0x18] sm:$0xf]
        %v313 = vld [vmem:[%s303 + $0x1c] sm:$0xf]
        %v314 = vld [vmem:[%s303 + $0x20] sm:$0xf]
        %v315 = vld [vmem:[%s303 + $0x24] sm:$0xf]
        %v316 = vld [vmem:[%s303 + $0x28] sm:$0xf]
        %v317 = vld [vmem:[%s303 + $0x2c] sm:$0xf]
        %v318 = vld [vmem:[%s303 + $0x30] sm:$0xf]
        %v319 = vld [vmem:[%s303 + $0x34] sm:$0xf]
        %v320 = vld [vmem:[%s303 + $0x38] sm:$0xf]
        %v321 = vld [vmem:[%s303 + $0x3c] sm:$0xf]
        %v322 = vld [vmem:[%s303 + $0x40] sm:$0xf]
        %v323 = vld [vmem:[%s303 + $0x44] sm:$0xf]
        %v324 = vld [vmem:[%s303 + $0x48] sm:$0xf]
        %v325 = vld [vmem:[%s303 + $0x4c] sm:$0xf]
        %v326 = vld [vmem:[%s303 + $0x50] sm:$0xf]
        %v327 = vld [vmem:[%s303 + $0x54] sm:$0xf]
        %v328 = vld [vmem:[%s303 + $0x58] sm:$0xf]
        %v329 = vld [vmem:[%s303 + $0x5c] sm:$0xf]
        %v330 = vld [vmem:[%s303 + $0x60] sm:$0xf]
        %v331 = vld [vmem:[%s303 + $0x64] sm:$0xf]
        %v332 = vld [vmem:[%s303 + $0x68] sm:$0xf]
        %v333 = vld [vmem:[%s303 + $0x6c] sm:$0xf]
        %v334 = vld [vmem:[%s303 + $0x70] sm:$0xf]
        %v335 = vld [vmem:[%s303 + $0x74] sm:$0xf]
        %v336 = vld [vmem:[%s303 + $0x78] sm:$0xf]
        %v337 = vld [vmem:[%s303 + $0x7c] sm:$0xf]
        %v338 = vld [vmem:[%s1] sm:$0x3]
        %v339 = vld [vmem:[%s2] sm:$0x1]
        %v341 = vlaneseq
        %v342 = vshrl.u32 %v341, 7
        %v343 = vsub.s32 0, %v342
        %v344 = vrot.slane %v339, %v343
        %v378 = vunpack.c.l.b16 %v306
        %v379 = vunpack.c.l.b16 %v307
        %v380 = vunpack.c.l.b16 %v308
        %v381 = vunpack.c.l.b16 %v309
        %v382 = vunpack.c.l.b16 %v310
        %v383 = vunpack.c.l.b16 %v311
        %v384 = vunpack.c.l.b16 %v312
        %v385 = vunpack.c.l.b16 %v313
        %v386 = vunpack.c.l.b16 %v314
        %v387 = vunpack.c.l.b16 %v315
        %v388 = vunpack.c.l.b16 %v316
        %v389 = vunpack.c.l.b16 %v317
        %v390 = vunpack.c.l.b16 %v318
        %v391 = vunpack.c.l.b16 %v319
        %v392 = vunpack.c.l.b16 %v320
        %v393 = vunpack.c.l.b16 %v321
        %v394 = vunpack.c.l.b16 %v322
        %v395 = vunpack.c.l.b16 %v323
        %v396 = vunpack.c.l.b16 %v324
        %v397 = vunpack.c.l.b16 %v325
        %v398 = vunpack.c.l.b16 %v326
        %v399 = vunpack.c.l.b16 %v327
        %v400 = vunpack.c.l.b16 %v328
        %v401 = vunpack.c.l.b16 %v329
        %v402 = vunpack.c.l.b16 %v330
        %v403 = vunpack.c.l.b16 %v331
        %v404 = vunpack.c.l.b16 %v332
        %v405 = vunpack.c.l.b16 %v333
        %v406 = vunpack.c.l.b16 %v334
        %v407 = vunpack.c.l.b16 %v335
        %v408 = vunpack.c.l.b16 %v336
        %v409 = vunpack.c.l.b16 %v337
        %v410 = vpack.c.b16 %v379, %v378
        %v411 = vpack.c.b16 %v381, %v380
        %v412 = vpack.c.b16 %v383, %v382
        %v413 = vpack.c.b16 %v385, %v384
        %v414 = vpack.c.b16 %v387, %v386
        %v415 = vpack.c.b16 %v389, %v388
        %v416 = vpack.c.b16 %v391, %v390
        %v417 = vpack.c.b16 %v393, %v392
        %v418 = vpack.c.b16 %v395, %v394
        %v419 = vpack.c.b16 %v397, %v396
        %v420 = vpack.c.b16 %v399, %v398
        %v421 = vpack.c.b16 %v401, %v400
        %v422 = vpack.c.b16 %v403, %v402
        %v423 = vpack.c.b16 %v405, %v404
        %v424 = vpack.c.b16 %v407, %v406
        %v425 = vpack.c.b16 %v409, %v408
        %vm426 = vcmask 23552
        %v428 = vsel %vm426, %v410, 0
        %v431 = vsel %vm426, %v411, 0
        %v434 = vsel %vm426, %v412, 0
        %v437 = vsel %vm426, %v413, 0
        %v440 = vsel %vm426, %v414, 0
        %v443 = vsel %vm426, %v415, 0
        %v446 = vsel %vm426, %v416, 0
        %v449 = vsel %vm426, %v417, 0
        %v452 = vsel %vm426, %v418, 0
        %v455 = vsel %vm426, %v419, 0
        %v458 = vsel %vm426, %v420, 0
        %v461 = vsel %vm426, %v421, 0
        %v464 = vsel %vm426, %v422, 0
        %v467 = vsel %vm426, %v423, 0
        %v470 = vsel %vm426, %v424, 0
        %v473 = vsel %vm426, %v425, 0
        %vm475 = vcmask 1040384
        %vm476 = vcmask 1041408
        %v477 = vsel %vm475, 4294967295, 65535
        %v478 = vsel %vm476, %v477, 0
        %v480 = vand.u32 %v338, %v478
        %482 = vmatprep.subr.bf16.mxu0 0
        %483 = vmatpush1.bf16.msra.mxu0 %v480
        %484 = vmatprep.subr.bf16.mxu0 0
        %485 = vmatpush1.bf16.msra.mxu0 0
        %486 = vmatprep.subr.bf16.mxu0 0
        %487 = vmatpush1.bf16.msra.mxu0 0
        %488 = vmatprep.subr.bf16.mxu0 0
        %489 = vmatpush1.bf16.msra.mxu0 0
        %490 = vmatprep.subr.bf16.mxu0 0
        %491 = vmatpush1.bf16.msra.mxu0 0
        %492 = vmatprep.subr.bf16.mxu0 0
        %493 = vmatpush1.bf16.msra.mxu0 0
        %494 = vmatprep.subr.bf16.mxu0 0
        %495 = vmatpush1.bf16.msra.mxu0 0
        %496 = vmatprep.subr.bf16.mxu0 0
        %497 = vmatpush1.bf16.msra.mxu0 0
        %498 = vmatprep.subr.bf16.mxu0 0
        %499 = vmatpush1.bf16.msra.mxu0 0
        %500 = vmatprep.subr.bf16.mxu0 0
        %501 = vmatpush1.bf16.msra.mxu0 0
        %502 = vmatprep.subr.bf16.mxu0 0
        %503 = vmatpush1.bf16.msra.mxu0 0
        %504 = vmatprep.subr.bf16.mxu0 0
        %505 = vmatpush1.bf16.msra.mxu0 0
        %506 = vmatprep.subr.bf16.mxu0 0
        %507 = vmatpush1.bf16.msra.mxu0 0
        %508 = vmatprep.subr.bf16.mxu0 0
        %509 = vmatpush1.bf16.msra.mxu0 0
        %510 = vmatprep.subr.bf16.mxu0 0
        %511 = vmatpush1.bf16.msra.mxu0 0
        %512 = vmatprep.subr.bf16.mxu0 0
        %513 = vmatpush1.bf16.msra.mxu0 0
        %514 = vmatprep.mubr.bf16.mxu0 0
        %515 = vmatmul.mubr.bf16.gmra.mrb[0].mxu0 %v428
        %v516 = vpop.f32.mrb[0].mxu0
        %v517 = vadd.f32 %v344, %v516
        %v518 = vpop.f32.mrb[0].mxu0
        %v519 = vpop.f32.mrb[0].mxu0
        %v520 = vadd.f32 %v344, %v519
        %v521 = vpop.f32.mrb[0].mxu0
        %522 = vmatprep.mubr.bf16.mxu0 0
        %523 = vmatmul.mubr.bf16.gmra.mrb[0].mxu0 %v431
        %v524 = vpop.f32.mrb[0].mxu0
        %v525 = vadd.f32 %v344, %v524
        %v526 = vpop.f32.mrb[0].mxu0
        %v527 = vpop.f32.mrb[0].mxu0
        %v528 = vadd.f32 %v344, %v527
        %v529 = vpop.f32.mrb[0].mxu0
        %530 = vmatprep.mubr.bf16.mxu0 0
        %531 = vmatmul.mubr.bf16.gmra.mrb[0].mxu0 %v434
        %v532 = vpop.f32.mrb[0].mxu0
        %v533 = vadd.f32 %v344, %v532
        %v534 = vpop.f32.mrb[0].mxu0
        %v535 = vpop.f32.mrb[0].mxu0
        %v536 = vadd.f32 %v344, %v535
        %v537 = vpop.f32.mrb[0].mxu0
        %538 = vmatprep.mubr.bf16.mxu0 0
        %539 = vmatmul.mubr.bf16.gmra.mrb[0].mxu0 %v437
        %v540 = vpop.f32.mrb[0].mxu0
        %v541 = vadd.f32 %v344, %v540
        %v542 = vpop.f32.mrb[0].mxu0
        %v543 = vpop.f32.mrb[0].mxu0
        %v544 = vadd.f32 %v344, %v543
        %v545 = vpop.f32.mrb[0].mxu0
        %546 = vmatprep.mubr.bf16.mxu0 0
        %547 = vmatmul.mubr.bf16.gmra.mrb[0].mxu0 %v440
        %v548 = vpop.f32.mrb[0].mxu0
        %v549 = vadd.f32 %v344, %v548
        %v550 = vpop.f32.mrb[0].mxu0
        %v551 = vpop.f32.mrb[0].mxu0
        %v552 = vadd.f32 %v344, %v551
        %v553 = vpop.f32.mrb[0].mxu0
        %554 = vmatprep.mubr.bf16.mxu0 0
        %555 = vmatmul.mubr.bf16.gmra.mrb[0].mxu0 %v443
        %v556 = vpop.f32.mrb[0].mxu0
        %v557 = vadd.f32 %v344, %v556
        %v558 = vpop.f32.mrb[0].mxu0
        %v559 = vpop.f32.mrb[0].mxu0
        %v560 = vadd.f32 %v344, %v559
        %v561 = vpop.f32.mrb[0].mxu0
        %562 = vmatprep.mubr.bf16.mxu0 0
        %563 = vmatmul.mubr.bf16.gmra.mrb[0].mxu0 %v446
        %v564 = vpop.f32.mrb[0].mxu0
        %v565 = vadd.f32 %v344, %v564
        %v566 = vpop.f32.mrb[0].mxu0
        %v567 = vpop.f32.mrb[0].mxu0
        %v568 = vadd.f32 %v344, %v567
        %v569 = vpop.f32.mrb[0].mxu0
        %570 = vmatprep.mubr.bf16.mxu0 0
        %571 = vmatmul.mubr.bf16.gmra.mrb[0].mxu0 %v449
        %v572 = vpop.f32.mrb[0].mxu0
        %v573 = vadd.f32 %v344, %v572
        %v574 = vpop.f32.mrb[0].mxu0
        %v575 = vpop.f32.mrb[0].mxu0
        %v576 = vadd.f32 %v344, %v575
        %v577 = vpop.f32.mrb[0].mxu0
        %578 = vmatprep.mubr.bf16.mxu0 0
        %579 = vmatmul.mubr.bf16.gmra.mrb[0].mxu0 %v452
        %v580 = vpop.f32.mrb[0].mxu0
        %v581 = vadd.f32 %v344, %v580
        %v582 = vpop.f32.mrb[0].mxu0
        %v583 = vpop.f32.mrb[0].mxu0
        %v584 = vadd.f32 %v344, %v583
        %v585 = vpop.f32.mrb[0].mxu0
        %586 = vmatprep.mubr.bf16.mxu0 0
        %587 = vmatmul.mubr.bf16.gmra.mrb[0].mxu0 %v455
        %v588 = vpop.f32.mrb[0].mxu0
        %v589 = vadd.f32 %v344, %v588
        %v590 = vpop.f32.mrb[0].mxu0
        %v591 = vpop.f32.mrb[0].mxu0
        %v592 = vadd.f32 %v344, %v591
        %v593 = vpop.f32.mrb[0].mxu0
        %594 = vmatprep.mubr.bf16.mxu0 0
        %595 = vmatmul.mubr.bf16.gmra.mrb[0].mxu0 %v458
        %v596 = vpop.f32.mrb[0].mxu0
        %v597 = vadd.f32 %v344, %v596
        %v598 = vpop.f32.mrb[0].mxu0
        %v599 = vpop.f32.mrb[0].mxu0
        %v600 = vadd.f32 %v344, %v599
        %v601 = vpop.f32.mrb[0].mxu0
        %602 = vmatprep.mubr.bf16.mxu0 0
        %603 = vmatmul.mubr.bf16.gmra.mrb[0].mxu0 %v461
        %v604 = vpop.f32.mrb[0].mxu0
        %v605 = vadd.f32 %v344, %v604
        %v606 = vpop.f32.mrb[0].mxu0
        %v607 = vpop.f32.mrb[0].mxu0
        %v608 = vadd.f32 %v344, %v607
        %v609 = vpop.f32.mrb[0].mxu0
        %610 = vmatprep.mubr.bf16.mxu0 0
        %611 = vmatmul.mubr.bf16.gmra.mrb[0].mxu0 %v464
        %v612 = vpop.f32.mrb[0].mxu0
        %v613 = vadd.f32 %v344, %v612
        %v614 = vpop.f32.mrb[0].mxu0
        %v615 = vpop.f32.mrb[0].mxu0
        %v616 = vadd.f32 %v344, %v615
        %v617 = vpop.f32.mrb[0].mxu0
        %618 = vmatprep.mubr.bf16.mxu0 0
        %619 = vmatmul.mubr.bf16.gmra.mrb[0].mxu0 %v467
        %v620 = vpop.f32.mrb[0].mxu0
        %v621 = vadd.f32 %v344, %v620
        %v622 = vpop.f32.mrb[0].mxu0
        %v623 = vpop.f32.mrb[0].mxu0
        %v624 = vadd.f32 %v344, %v623
        %v625 = vpop.f32.mrb[0].mxu0
        %626 = vmatprep.mubr.bf16.mxu0 0
        %627 = vmatmul.mubr.bf16.gmra.mrb[0].mxu0 %v470
        %v628 = vpop.f32.mrb[0].mxu0
        %v629 = vadd.f32 %v344, %v628
        %v630 = vpop.f32.mrb[0].mxu0
        %v631 = vpop.f32.mrb[0].mxu0
        %v632 = vadd.f32 %v344, %v631
        %v633 = vpop.f32.mrb[0].mxu0
        %634 = vmatprep.mubr.bf16.mxu0 0
        %635 = vmatmul.mubr.bf16.gmra.mrb[0].mxu0 %v473
        %v636 = vpop.f32.mrb[0].mxu0
        %v637 = vadd.f32 %v344, %v636
        %v638 = vpop.f32.mrb[0].mxu0
        %v639 = vpop.f32.mrb[0].mxu0
        %v640 = vadd.f32 %v344, %v639
        %v641 = vpop.f32.mrb[0].mxu0
        %642 = vdwg.mxu0
        %v643 = vmax.f32 %v517, 0.0
        %v644 = vmax.f32 %v520, 0.0
        %v645 = vmax.f32 %v525, 0.0
        %v646 = vmax.f32 %v528, 0.0
        %v647 = vmax.f32 %v533, 0.0
        %v648 = vmax.f32 %v536, 0.0
        %v649 = vmax.f32 %v541, 0.0
        %v650 = vmax.f32 %v544, 0.0
        %v651 = vmax.f32 %v549, 0.0
        %v652 = vmax.f32 %v552, 0.0
        %v653 = vmax.f32 %v557, 0.0
        %v654 = vmax.f32 %v560, 0.0
        %v655 = vmax.f32 %v565, 0.0
        %v656 = vmax.f32 %v568, 0.0
        %v657 = vmax.f32 %v573, 0.0
        %v658 = vmax.f32 %v576, 0.0
        %v659 = vmax.f32 %v581, 0.0
        %v660 = vmax.f32 %v584, 0.0
        %v661 = vmax.f32 %v589, 0.0
        %v662 = vmax.f32 %v592, 0.0
        %v663 = vmax.f32 %v597, 0.0
        %v664 = vmax.f32 %v600, 0.0
        %v665 = vmax.f32 %v605, 0.0
        %v666 = vmax.f32 %v608, 0.0
        %v667 = vmax.f32 %v613, 0.0
        %v668 = vmax.f32 %v616, 0.0
        %v669 = vmax.f32 %v621, 0.0
        %v670 = vmax.f32 %v624, 0.0
        %v671 = vmax.f32 %v629, 0.0
        %v672 = vmax.f32 %v632, 0.0
        %v673 = vmax.f32 %v637, 0.0
        %v674 = vmax.f32 %v640, 0.0
        %v675 = vadd.f32 %v643, %v644
        %v676 = vadd.f32 %v675, %v645
        %v677 = vadd.f32 %v676, %v646
        %v678 = vadd.f32 %v677, %v647
        %v679 = vadd.f32 %v678, %v648
        %v680 = vadd.f32 %v679, %v649
        %v681 = vadd.f32 %v680, %v650
        %v682 = vrot.slane %v681, 4
        %v683 = vadd.f32 %v681, %v682
        %v684 = vrot.slane %v683, 2
        %v685 = vadd.f32 %v683, %v684
        %v686 = vrot.slane %v685, 1
        %v687 = vadd.f32 %v685, %v686
        %v688 = vadd.f32 %v651, %v652
        %v689 = vadd.f32 %v688, %v653
        %v690 = vadd.f32 %v689, %v654
        %v691 = vadd.f32 %v690, %v655
        %v692 = vadd.f32 %v691, %v656
        %v693 = vadd.f32 %v692, %v657
        %v694 = vadd.f32 %v693, %v658
        %v695 = vrot.slane %v694, 4
        %v696 = vadd.f32 %v694, %v695
        %v697 = vrot.slane %v696, 2
        %v698 = vadd.f32 %v696, %v697
        %v699 = vrot.slane %v698, 1
        %v700 = vadd.f32 %v698, %v699
        %v701 = vadd.f32 %v659, %v660
        %v702 = vadd.f32 %v701, %v661
        %v703 = vadd.f32 %v702, %v662
        %v704 = vadd.f32 %v703, %v663
        %v705 = vadd.f32 %v704, %v664
        %v706 = vadd.f32 %v705, %v665
        %v707 = vadd.f32 %v706, %v666
        %v708 = vrot.slane %v707, 4
        %v709 = vadd.f32 %v707, %v708
        %v710 = vrot.slane %v709, 2
        %v711 = vadd.f32 %v709, %v710
        %v712 = vrot.slane %v711, 1
        %v713 = vadd.f32 %v711, %v712
        %v714 = vadd.f32 %v667, %v668
        %v715 = vadd.f32 %v714, %v669
        %v716 = vadd.f32 %v715, %v670
        %v717 = vadd.f32 %v716, %v671
        %v718 = vadd.f32 %v717, %v672
        %v719 = vadd.f32 %v718, %v673
        %v720 = vadd.f32 %v719, %v674
        %v721 = vrot.slane %v720, 4
        %v722 = vadd.f32 %v720, %v721
        %v723 = vrot.slane %v722, 2
        %v724 = vadd.f32 %v722, %v723
        %v725 = vrot.slane %v724, 1
        %v726 = vadd.f32 %v724, %v725
        %v727 = vrcp.pop 64.0
        %v728 = vmul.f32 %v687, %v727
        %v729 = vmul.f32 %v700, %v727
        %v730 = vmul.f32 %v713, %v727
        %v731 = vmul.f32 %v726, %v727
        %v732 = vpack.c.bf16 %v728, %v728
        %v733 = vpack.c.bf16 %v729, %v729
        %v734 = vpack.c.bf16 %v730, %v730
        %v735 = vpack.c.bf16 %v731, %v731
        %v736 = vld [vmem:[%s3] sm:$0xff]
        %v737 = vld [vmem:[%s3 + $0x8] sm:$0xff]
        %v738 = vld [vmem:[%s3 + $0x10] sm:$0xff]
        %v739 = vld [vmem:[%s3 + $0x18] sm:$0xff]
        %v740 = vld [vmem:[%s3 + $0x20] sm:$0xff]
        %v741 = vld [vmem:[%s3 + $0x28] sm:$0xff]
        %v742 = vld [vmem:[%s3 + $0x30] sm:$0xff]
        %v743 = vld [vmem:[%s3 + $0x38] sm:$0xff]
        %v744 = vld [vmem:[%s3 + $0x40] sm:$0xff]
        %v745 = vld [vmem:[%s3 + $0x48] sm:$0xff]
        %v746 = vld [vmem:[%s3 + $0x50] sm:$0xff]
        %v747 = vld [vmem:[%s3 + $0x58] sm:$0xff]
        %v748 = vld [vmem:[%s3 + $0x60] sm:$0xff]
        %v749 = vld [vmem:[%s3 + $0x68] sm:$0xff]
        %v750 = vld [vmem:[%s3 + $0x70] sm:$0xff]
        %v751 = vld [vmem:[%s3 + $0x78] sm:$0xff]
        %v752 = vld [vmem:[%s3 + $0x80] sm:$0xff]
        %v753 = vld [vmem:[%s3 + $0x88] sm:$0xff]
        %v754 = vld [vmem:[%s3 + $0x90] sm:$0xff]
        %v755 = vld [vmem:[%s3 + $0x98] sm:$0xff]
        %v756 = vld [vmem:[%s3 + $0xa0] sm:$0xff]
        %v757 = vld [vmem:[%s3 + $0xa8] sm:$0xff]
        %v758 = vld [vmem:[%s3 + $0xb0] sm:$0xff]
        %v759 = vld [vmem:[%s3 + $0xb8] sm:$0xff]
        %v760 = vld [vmem:[%s3 + $0xc0] sm:$0xff]
        %v761 = vld [vmem:[%s3 + $0xc8] sm:$0xff]
        %v762 = vld [vmem:[%s3 + $0xd0] sm:$0xff]
        %v763 = vld [vmem:[%s3 + $0xd8] sm:$0xff]
        %v764 = vld [vmem:[%s3 + $0xe0] sm:$0xff]
        %v765 = vld [vmem:[%s3 + $0xe8] sm:$0xff]
        %v766 = vld [vmem:[%s3 + $0xf0] sm:$0xff]
        %v767 = vld [vmem:[%s3 + $0xf8] sm:$0xff]
        %v768 = vld [vmem:[%s5] sm:$0xf]
        %v770 = vlaneseq
        %v771 = vshrl.u32 %v770, 7
        %v772 = vsub.s32 0, %v771
        %v773 = vrot.slane %v768, %v772
        %v774 = vlaneseq
        %v775 = vshrl.u32 %v774, 7
        %v776 = vsub.s32 1, %v775
        %v777 = vrot.slane %v768, %v776
        %v778 = vlaneseq
        %v779 = vshrl.u32 %v778, 7
        %v780 = vsub.s32 2, %v779
        %v781 = vrot.slane %v768, %v780
        %v782 = vlaneseq
        %v783 = vshrl.u32 %v782, 7
        %v784 = vsub.s32 3, %v783
        %v785 = vrot.slane %v768, %v784
        %v794 = vunpack.c.l.b16 %v732
        %v795 = vunpack.c.l.b16 %v733
        %v796 = vunpack.c.l.b16 %v734
        %v797 = vunpack.c.l.b16 %v735
        %vm798 = vcmask 1041409
        %v799 = vsel %vm798, %v795, %v794
        %vm800 = vcmask 1042434
        %v801 = vsel %vm800, %v796, %v799
        %vm802 = vcmask 1043459
        %v803 = vsel %vm802, %v797, %v801
        %v804 = vpack.c.b16 %v803, %v803
        %v838 = vunpack.c.l.b16 %v736
        %v839 = vunpack.c.h.b16 %v736
        %v840 = vunpack.c.l.b16 %v737
        %v841 = vunpack.c.h.b16 %v737
        %v842 = vunpack.c.l.b16 %v738
        %v843 = vunpack.c.h.b16 %v738
        %v844 = vunpack.c.l.b16 %v739
        %v845 = vunpack.c.h.b16 %v739
        %v846 = vunpack.c.l.b16 %v740
        %v847 = vunpack.c.h.b16 %v740
        %v848 = vunpack.c.l.b16 %v741
        %v849 = vunpack.c.h.b16 %v741
        %v850 = vunpack.c.l.b16 %v742
        %v851 = vunpack.c.h.b16 %v742
        %v852 = vunpack.c.l.b16 %v743
        %v853 = vunpack.c.h.b16 %v743
        %v854 = vunpack.c.l.b16 %v744
        %v855 = vunpack.c.h.b16 %v744
        %v856 = vunpack.c.l.b16 %v745
        %v857 = vunpack.c.h.b16 %v745
        %v858 = vunpack.c.l.b16 %v746
        %v859 = vunpack.c.h.b16 %v746
        %v860 = vunpack.c.l.b16 %v747
        %v861 = vunpack.c.h.b16 %v747
        %v862 = vunpack.c.l.b16 %v748
        %v863 = vunpack.c.h.b16 %v748
        %v864 = vunpack.c.l.b16 %v749
        %v865 = vunpack.c.h.b16 %v749
        %v866 = vunpack.c.l.b16 %v750
        %v867 = vunpack.c.h.b16 %v750
        %v868 = vunpack.c.l.b16 %v751
        %v869 = vunpack.c.h.b16 %v751
        %v870 = vunpack.c.l.b16 %v752
        %v871 = vunpack.c.h.b16 %v752
        %v872 = vunpack.c.l.b16 %v753
        %v873 = vunpack.c.h.b16 %v753
        %v874 = vunpack.c.l.b16 %v754
        %v875 = vunpack.c.h.b16 %v754
        %v876 = vunpack.c.l.b16 %v755
        %v877 = vunpack.c.h.b16 %v755
        %v878 = vunpack.c.l.b16 %v756
        %v879 = vunpack.c.h.b16 %v756
        %v880 = vunpack.c.l.b16 %v757
        %v881 = vunpack.c.h.b16 %v757
        %v882 = vunpack.c.l.b16 %v758
        %v883 = vunpack.c.h.b16 %v758
        %v884 = vunpack.c.l.b16 %v759
        %v885 = vunpack.c.h.b16 %v759
        %v886 = vunpack.c.l.b16 %v760
        %v887 = vunpack.c.h.b16 %v760
        %v888 = vunpack.c.l.b16 %v761
        %v889 = vunpack.c.h.b16 %v761
        %v890 = vunpack.c.l.b16 %v762
        %v891 = vunpack.c.h.b16 %v762
        %v892 = vunpack.c.l.b16 %v763
        %v893 = vunpack.c.h.b16 %v763
        %v894 = vunpack.c.l.b16 %v764
        %v895 = vunpack.c.h.b16 %v764
        %v896 = vunpack.c.l.b16 %v765
        %v897 = vunpack.c.h.b16 %v765
        %v898 = vunpack.c.l.b16 %v766
        %v899 = vunpack.c.h.b16 %v766
        %v900 = vunpack.c.l.b16 %v767
        %v901 = vunpack.c.h.b16 %v767
        %v902 = vpack.c.b16 %v842, %v838
        %v903 = vpack.c.b16 %v843, %v839
        %v904 = vpack.c.b16 %v844, %v840
        %v905 = vpack.c.b16 %v845, %v841
        %v906 = vpack.c.b16 %v850, %v846
        %v907 = vpack.c.b16 %v851, %v847
        %v908 = vpack.c.b16 %v852, %v848
        %v909 = vpack.c.b16 %v853, %v849
        %v910 = vpack.c.b16 %v858, %v854
        %v911 = vpack.c.b16 %v859, %v855
        %v912 = vpack.c.b16 %v860, %v856
        %v913 = vpack.c.b16 %v861, %v857
        %v914 = vpack.c.b16 %v866, %v862
        %v915 = vpack.c.b16 %v867, %v863
        %v916 = vpack.c.b16 %v868, %v864
        %v917 = vpack.c.b16 %v869, %v865
        %v918 = vpack.c.b16 %v874, %v870
        %v919 = vpack.c.b16 %v875, %v871
        %v920 = vpack.c.b16 %v876, %v872
        %v921 = vpack.c.b16 %v877, %v873
        %v922 = vpack.c.b16 %v882, %v878
        %v923 = vpack.c.b16 %v883, %v879
        %v924 = vpack.c.b16 %v884, %v880
        %v925 = vpack.c.b16 %v885, %v881
        %v926 = vpack.c.b16 %v890, %v886
        %v927 = vpack.c.b16 %v891, %v887
        %v928 = vpack.c.b16 %v892, %v888
        %v929 = vpack.c.b16 %v893, %v889
        %v930 = vpack.c.b16 %v898, %v894
        %v931 = vpack.c.b16 %v899, %v895
        %v932 = vpack.c.b16 %v900, %v896
        %v933 = vpack.c.b16 %v901, %v897
        %966 = vmatprep.subr.bf16.mxu0 %v903
        %967 = vmatpush1.bf16.msra.mxu0 %v902
        %968 = vmatprep.subr.bf16.mxu0 %v907
        %969 = vmatpush1.bf16.msra.mxu0 %v906
        %970 = vmatprep.subr.bf16.mxu0 %v911
        %971 = vmatpush1.bf16.msra.mxu0 %v910
        %972 = vmatprep.subr.bf16.mxu0 %v915
        %973 = vmatpush1.bf16.msra.mxu0 %v914
        %974 = vmatprep.subr.bf16.mxu0 %v919
        %975 = vmatpush1.bf16.msra.mxu0 %v918
        %976 = vmatprep.subr.bf16.mxu0 %v923
        %977 = vmatpush1.bf16.msra.mxu0 %v922
        %978 = vmatprep.subr.bf16.mxu0 %v927
        %979 = vmatpush1.bf16.msra.mxu0 %v926
        %980 = vmatprep.subr.bf16.mxu0 %v931
        %981 = vmatpush1.bf16.msra.mxu0 %v930
        %982 = vmatprep.subr.bf16.mxu0 0
        %983 = vmatpush1.bf16.msra.mxu0 0
        %984 = vmatprep.subr.bf16.mxu0 0
        %985 = vmatpush1.bf16.msra.mxu0 0
        %986 = vmatprep.subr.bf16.mxu0 0
        %987 = vmatpush1.bf16.msra.mxu0 0
        %988 = vmatprep.subr.bf16.mxu0 0
        %989 = vmatpush1.bf16.msra.mxu0 0
        %990 = vmatprep.subr.bf16.mxu0 0
        %991 = vmatpush1.bf16.msra.mxu0 0
        %992 = vmatprep.subr.bf16.mxu0 0
        %993 = vmatpush1.bf16.msra.mxu0 0
        %994 = vmatprep.subr.bf16.mxu0 0
        %995 = vmatpush1.bf16.msra.mxu0 0
        %996 = vmatprep.subr.bf16.mxu0 0
        %997 = vmatpush1.bf16.msra.mxu0 0
        %998 = vmatprep.mubr.bf16.mxu0 0
        %999 = vmatmul.mubr.bf16.gmra.mrb[0].mxu0 %v804
        %v1000 = vpop.f32.mrb[0].mxu0
        %v1001 = vadd.f32 %v773, %v1000
        %v1002 = vpop.f32.mrb[0].mxu0
        %v1003 = vadd.f32 %v777, %v1002
        %v1004 = vpop.f32.mrb[0].mxu0
        %v1005 = vpop.f32.mrb[0].mxu0
        %1006 = vdwg.mxu0
        %1007 = vmatprep.subr.bf16.mxu0 %v905
        %1008 = vmatpush1.bf16.msra.mxu0 %v904
        %1009 = vmatprep.subr.bf16.mxu0 %v909
        %1010 = vmatpush1.bf16.msra.mxu0 %v908
        %1011 = vmatprep.subr.bf16.mxu0 %v913
        %1012 = vmatpush1.bf16.msra.mxu0 %v912
        %1013 = vmatprep.subr.bf16.mxu0 %v917
        %1014 = vmatpush1.bf16.msra.mxu0 %v916
        %1015 = vmatprep.subr.bf16.mxu0 %v921
        %1016 = vmatpush1.bf16.msra.mxu0 %v920
        %1017 = vmatprep.subr.bf16.mxu0 %v925
        %1018 = vmatpush1.bf16.msra.mxu0 %v924
        %1019 = vmatprep.subr.bf16.mxu0 %v929
        %1020 = vmatpush1.bf16.msra.mxu0 %v928
        %1021 = vmatprep.subr.bf16.mxu0 %v933
        %1022 = vmatpush1.bf16.msra.mxu0 %v932
        %1023 = vmatprep.subr.bf16.mxu0 0
        %1024 = vmatpush1.bf16.msra.mxu0 0
        %1025 = vmatprep.subr.bf16.mxu0 0
        %1026 = vmatpush1.bf16.msra.mxu0 0
        %1027 = vmatprep.subr.bf16.mxu0 0
        %1028 = vmatpush1.bf16.msra.mxu0 0
        %1029 = vmatprep.subr.bf16.mxu0 0
        %1030 = vmatpush1.bf16.msra.mxu0 0
        %1031 = vmatprep.subr.bf16.mxu0 0
        %1032 = vmatpush1.bf16.msra.mxu0 0
        %1033 = vmatprep.subr.bf16.mxu0 0
        %1034 = vmatpush1.bf16.msra.mxu0 0
        %1035 = vmatprep.subr.bf16.mxu0 0
        %1036 = vmatpush1.bf16.msra.mxu0 0
        %1037 = vmatprep.subr.bf16.mxu0 0
        %1038 = vmatpush1.bf16.msra.mxu0 0
        %1039 = vmatprep.mubr.bf16.mxu0 0
        %1040 = vmatmul.mubr.bf16.gmra.mrb[0].mxu0 %v804
        %v1041 = vpop.f32.mrb[0].mxu0
        %v1042 = vadd.f32 %v781, %v1041
        %v1043 = vpop.f32.mrb[0].mxu0
        %v1044 = vadd.f32 %v785, %v1043
        %v1045 = vpop.f32.mrb[0].mxu0
        %v1046 = vpop.f32.mrb[0].mxu0
        %1047 = vdwg.mxu0
        %v1048 = vld [vmem:[%s4] sm:$0xff]
        %v1049 = vld [vmem:[%s4 + $0x8] sm:$0xff]
        %v1050 = vld [vmem:[%s4 + $0x10] sm:$0xff]
        %v1051 = vld [vmem:[%s4 + $0x18] sm:$0xff]
        %v1052 = vld [vmem:[%s4 + $0x20] sm:$0xff]
        %v1053 = vld [vmem:[%s4 + $0x28] sm:$0xff]
        %v1054 = vld [vmem:[%s4 + $0x30] sm:$0xff]
        %v1055 = vld [vmem:[%s4 + $0x38] sm:$0xff]
        %v1056 = vld [vmem:[%s4 + $0x40] sm:$0xff]
        %v1057 = vld [vmem:[%s4 + $0x48] sm:$0xff]
        %v1058 = vld [vmem:[%s4 + $0x50] sm:$0xff]
        %v1059 = vld [vmem:[%s4 + $0x58] sm:$0xff]
        %v1060 = vld [vmem:[%s4 + $0x60] sm:$0xff]
        %v1061 = vld [vmem:[%s4 + $0x68] sm:$0xff]
        %v1062 = vld [vmem:[%s4 + $0x70] sm:$0xff]
        %v1063 = vld [vmem:[%s4 + $0x78] sm:$0xff]
        %v1064 = vld [vmem:[%s4 + $0x80] sm:$0xff]
        %v1065 = vld [vmem:[%s4 + $0x88] sm:$0xff]
        %v1066 = vld [vmem:[%s4 + $0x90] sm:$0xff]
        %v1067 = vld [vmem:[%s4 + $0x98] sm:$0xff]
        %v1068 = vld [vmem:[%s4 + $0xa0] sm:$0xff]
        %v1069 = vld [vmem:[%s4 + $0xa8] sm:$0xff]
        %v1070 = vld [vmem:[%s4 + $0xb0] sm:$0xff]
        %v1071 = vld [vmem:[%s4 + $0xb8] sm:$0xff]
        %v1072 = vld [vmem:[%s4 + $0xc0] sm:$0xff]
        %v1073 = vld [vmem:[%s4 + $0xc8] sm:$0xff]
        %v1074 = vld [vmem:[%s4 + $0xd0] sm:$0xff]
        %v1075 = vld [vmem:[%s4 + $0xd8] sm:$0xff]
        %v1076 = vld [vmem:[%s4 + $0xe0] sm:$0xff]
        %v1077 = vld [vmem:[%s4 + $0xe8] sm:$0xff]
        %v1078 = vld [vmem:[%s4 + $0xf0] sm:$0xff]
        %v1079 = vld [vmem:[%s4 + $0xf8] sm:$0xff]
        %v1080 = vld [vmem:[%s4 + $0x100] sm:$0xff]
        %v1081 = vld [vmem:[%s4 + $0x108] sm:$0xff]
        %v1082 = vld [vmem:[%s4 + $0x110] sm:$0xff]
        %v1083 = vld [vmem:[%s4 + $0x118] sm:$0xff]
        %v1084 = vld [vmem:[%s4 + $0x120] sm:$0xff]
        %v1085 = vld [vmem:[%s4 + $0x128] sm:$0xff]
        %v1086 = vld [vmem:[%s4 + $0x130] sm:$0xff]
        %v1087 = vld [vmem:[%s4 + $0x138] sm:$0xff]
        %v1088 = vld [vmem:[%s4 + $0x140] sm:$0xff]
        %v1089 = vld [vmem:[%s4 + $0x148] sm:$0xff]
        %v1090 = vld [vmem:[%s4 + $0x150] sm:$0xff]
        %v1091 = vld [vmem:[%s4 + $0x158] sm:$0xff]
        %v1092 = vld [vmem:[%s4 + $0x160] sm:$0xff]
        %v1093 = vld [vmem:[%s4 + $0x168] sm:$0xff]
        %v1094 = vld [vmem:[%s4 + $0x170] sm:$0xff]
        %v1095 = vld [vmem:[%s4 + $0x178] sm:$0xff]
        %v1096 = vld [vmem:[%s4 + $0x180] sm:$0xff]
        %v1097 = vld [vmem:[%s4 + $0x188] sm:$0xff]
        %v1098 = vld [vmem:[%s4 + $0x190] sm:$0xff]
        %v1099 = vld [vmem:[%s4 + $0x198] sm:$0xff]
        %v1100 = vld [vmem:[%s4 + $0x1a0] sm:$0xff]
        %v1101 = vld [vmem:[%s4 + $0x1a8] sm:$0xff]
        %v1102 = vld [vmem:[%s4 + $0x1b0] sm:$0xff]
        %v1103 = vld [vmem:[%s4 + $0x1b8] sm:$0xff]
        %v1104 = vld [vmem:[%s4 + $0x1c0] sm:$0xff]
        %v1105 = vld [vmem:[%s4 + $0x1c8] sm:$0xff]
        %v1106 = vld [vmem:[%s4 + $0x1d0] sm:$0xff]
        %v1107 = vld [vmem:[%s4 + $0x1d8] sm:$0xff]
        %v1108 = vld [vmem:[%s4 + $0x1e0] sm:$0xff]
        %v1109 = vld [vmem:[%s4 + $0x1e8] sm:$0xff]
        %v1110 = vld [vmem:[%s4 + $0x1f0] sm:$0xff]
        %v1111 = vld [vmem:[%s4 + $0x1f8] sm:$0xff]
        %1112 = vmatprep.subr.mxu0 %v1049
        %1113 = vmatpush1.msra.mxu0 %v1048
        %1114 = vmatprep.subr.mxu0 %v1053
        %1115 = vmatpush1.msra.mxu0 %v1052
        %1116 = vmatprep.subr.mxu0 %v1057
        %1117 = vmatpush1.msra.mxu0 %v1056
        %1118 = vmatprep.subr.mxu0 %v1061
        %1119 = vmatpush1.msra.mxu0 %v1060
        %1120 = vmatprep.subr.mxu0 %v1065
        %1121 = vmatpush1.msra.mxu0 %v1064
        %1122 = vmatprep.subr.mxu0 %v1069
        %1123 = vmatpush1.msra.mxu0 %v1068
        %1124 = vmatprep.subr.mxu0 %v1073
        %1125 = vmatpush1.msra.mxu0 %v1072
        %1126 = vmatprep.subr.mxu0 %v1077
        %1127 = vmatpush1.msra.mxu0 %v1076
        %1128 = vmatprep.subr.mxu0 %v1081
        %1129 = vmatpush1.msra.mxu0 %v1080
        %1130 = vmatprep.subr.mxu0 %v1085
        %1131 = vmatpush1.msra.mxu0 %v1084
        %1132 = vmatprep.subr.mxu0 %v1089
        %1133 = vmatpush1.msra.mxu0 %v1088
        %1134 = vmatprep.subr.mxu0 %v1093
        %1135 = vmatpush1.msra.mxu0 %v1092
        %1136 = vmatprep.subr.mxu0 %v1097
        %1137 = vmatpush1.msra.mxu0 %v1096
        %1138 = vmatprep.subr.mxu0 %v1101
        %1139 = vmatpush1.msra.mxu0 %v1100
        %1140 = vmatprep.subr.mxu0 %v1105
        %1141 = vmatpush1.msra.mxu0 %v1104
        %1142 = vmatprep.subr.mxu0 %v1109
        %1143 = vmatpush1.msra.mxu0 %v1108
        %1144 = vmatprep.subr.mxu0 0.0
        %1145 = vmatpush1.msra.mxu0 0.0
        %1146 = vmatprep.subr.mxu0 0.0
        %1147 = vmatpush1.msra.mxu0 0.0
        %1148 = vmatprep.subr.mxu0 0.0
        %1149 = vmatpush1.msra.mxu0 0.0
        %1150 = vmatprep.subr.mxu0 0.0
        %1151 = vmatpush1.msra.mxu0 0.0
        %1152 = vmatprep.subr.mxu0 0.0
        %1153 = vmatpush1.msra.mxu0 0.0
        %1154 = vmatprep.subr.mxu0 0.0
        %1155 = vmatpush1.msra.mxu0 0.0
        %1156 = vmatprep.subr.mxu0 0.0
        %1157 = vmatpush1.msra.mxu0 0.0
        %1158 = vmatprep.subr.mxu0 0.0
        %1159 = vmatpush1.msra.mxu0 0.0
        %1160 = vmatprep.subr.mxu0 0.0
        %1161 = vmatpush1.msra.mxu0 0.0
        %1162 = vmatprep.subr.mxu0 0.0
        %1163 = vmatpush1.msra.mxu0 0.0
        %1164 = vmatprep.subr.mxu0 0.0
        %1165 = vmatpush1.msra.mxu0 0.0
        %1166 = vmatprep.subr.mxu0 0.0
        %1167 = vmatpush1.msra.mxu0 0.0
        %1168 = vmatprep.subr.mxu0 0.0
        %1169 = vmatpush1.msra.mxu0 0.0
        %1170 = vmatprep.subr.mxu0 0.0
        %1171 = vmatpush1.msra.mxu0 0.0
        %1172 = vmatprep.subr.mxu0 0.0
        %1173 = vmatpush1.msra.mxu0 0.0
        %1174 = vmatprep.subr.mxu0 0.0
        %1175 = vmatpush1.msra.mxu0 0.0
        %1176 = vmatprep.mubr.f32.mxu0 0.0
        %1177 = vmatmul.mubr.f32.gmra.mrb[0].mxu0 0.0
        %v1178 = vpop.f32.mrb[0].mxu0
        %v1179 = vadd.f32 0.0, %v1178
        %v1180 = vpop.f32.mrb[0].mxu0
        %v1181 = vadd.f32 0.0, %v1180
        %1182 = vdwg.mxu0
        %1183 = vmatprep.subr.mxu0 %v1051
        %1184 = vmatpush1.msra.mxu0 %v1050
        %1185 = vmatprep.subr.mxu0 %v1055
        %1186 = vmatpush1.msra.mxu0 %v1054
        %1187 = vmatprep.subr.mxu0 %v1059
        %1188 = vmatpush1.msra.mxu0 %v1058
        %1189 = vmatprep.subr.mxu0 %v1063
        %1190 = vmatpush1.msra.mxu0 %v1062
        %1191 = vmatprep.subr.mxu0 %v1067
        %1192 = vmatpush1.msra.mxu0 %v1066
        %1193 = vmatprep.subr.mxu0 %v1071
        %1194 = vmatpush1.msra.mxu0 %v1070
        %1195 = vmatprep.subr.mxu0 %v1075
        %1196 = vmatpush1.msra.mxu0 %v1074
        %1197 = vmatprep.subr.mxu0 %v1079
        %1198 = vmatpush1.msra.mxu0 %v1078
        %1199 = vmatprep.subr.mxu0 %v1083
        %1200 = vmatpush1.msra.mxu0 %v1082
        %1201 = vmatprep.subr.mxu0 %v1087
        %1202 = vmatpush1.msra.mxu0 %v1086
        %1203 = vmatprep.subr.mxu0 %v1091
        %1204 = vmatpush1.msra.mxu0 %v1090
        %1205 = vmatprep.subr.mxu0 %v1095
        %1206 = vmatpush1.msra.mxu0 %v1094
        %1207 = vmatprep.subr.mxu0 %v1099
        %1208 = vmatpush1.msra.mxu0 %v1098
        %1209 = vmatprep.subr.mxu0 %v1103
        %1210 = vmatpush1.msra.mxu0 %v1102
        %1211 = vmatprep.subr.mxu0 %v1107
        %1212 = vmatpush1.msra.mxu0 %v1106
        %1213 = vmatprep.subr.mxu0 %v1111
        %1214 = vmatpush1.msra.mxu0 %v1110
        %1215 = vmatprep.subr.mxu0 0.0
        %1216 = vmatpush1.msra.mxu0 0.0
        %1217 = vmatprep.subr.mxu0 0.0
        %1218 = vmatpush1.msra.mxu0 0.0
        %1219 = vmatprep.subr.mxu0 0.0
        %1220 = vmatpush1.msra.mxu0 0.0
        %1221 = vmatprep.subr.mxu0 0.0
        %1222 = vmatpush1.msra.mxu0 0.0
        %1223 = vmatprep.subr.mxu0 0.0
        %1224 = vmatpush1.msra.mxu0 0.0
        %1225 = vmatprep.subr.mxu0 0.0
        %1226 = vmatpush1.msra.mxu0 0.0
        %1227 = vmatprep.subr.mxu0 0.0
        %1228 = vmatpush1.msra.mxu0 0.0
        %1229 = vmatprep.subr.mxu0 0.0
        %1230 = vmatpush1.msra.mxu0 0.0
        %1231 = vmatprep.subr.mxu0 0.0
        %1232 = vmatpush1.msra.mxu0 0.0
        %1233 = vmatprep.subr.mxu0 0.0
        %1234 = vmatpush1.msra.mxu0 0.0
        %1235 = vmatprep.subr.mxu0 0.0
        %1236 = vmatpush1.msra.mxu0 0.0
        %1237 = vmatprep.subr.mxu0 0.0
        %1238 = vmatpush1.msra.mxu0 0.0
        %1239 = vmatprep.subr.mxu0 0.0
        %1240 = vmatpush1.msra.mxu0 0.0
        %1241 = vmatprep.subr.mxu0 0.0
        %1242 = vmatpush1.msra.mxu0 0.0
        %1243 = vmatprep.subr.mxu0 0.0
        %1244 = vmatpush1.msra.mxu0 0.0
        %1245 = vmatprep.subr.mxu0 0.0
        %1246 = vmatpush1.msra.mxu0 0.0
        %1247 = vmatprep.mubr.f32.mxu0 0.0
        %1248 = vmatmul.mubr.f32.gmra.mrb[0].mxu0 0.0
        %v1249 = vpop.f32.mrb[0].mxu0
        %v1250 = vadd.f32 0.0, %v1249
        %v1251 = vpop.f32.mrb[0].mxu0
        %v1252 = vadd.f32 0.0, %v1251
        %1253 = vdwg.mxu0
        %v1254 = vadd.f32 %v1001, %v1179
        %v1255 = vadd.f32 %v1003, %v1181
        %v1256 = vadd.f32 %v1042, %v1250
        %v1257 = vadd.f32 %v1044, %v1252
        %v1258 = vxor.u32 %v1254, 2147483648
        %v1259 = vmul.f32 %v1258, 1.442695
        %v1260 = vpow.pop %v1259
        %v1261 = vadd.f32 %v1260, 1.0
        %v1262 = vrcp.pop %v1261
        %v1263 = vmul.f32 1.0, %v1262
        %v1264 = vxor.u32 %v1255, 2147483648
        %v1265 = vmul.f32 %v1264, 1.442695
        %v1266 = vpow.pop %v1265
        %v1267 = vadd.f32 %v1266, 1.0
        %v1268 = vrcp.pop %v1267
        %v1269 = vmul.f32 1.0, %v1268
        %v1270 = vtanh.pop %v1256
        %v1271 = vxor.u32 %v1257, 2147483648
        %v1272 = vmul.f32 %v1271, 1.442695
        %v1273 = vpow.pop %v1272
        %v1274 = vadd.f32 %v1273, 1.0
        %v1275 = vrcp.pop %v1274
        %v1276 = vmul.f32 1.0, %v1275
        %v1277 = vmul.f32 %v1269, 0.0
        %v1278 = vmul.f32 %v1263, %v1270
        %v1279 = vadd.f32 %v1277, %v1278
        %v1280 = vtanh.pop %v1279
        %v1281 = vmul.f32 %v1276, %v1280
        %1282 = vmatprep.subr.mxu0 %v1049
        %1283 = vmatpush1.msra.mxu0 %v1048
        %1284 = vmatprep.subr.mxu0 %v1053
        %1285 = vmatpush1.msra.mxu0 %v1052
        %1286 = vmatprep.subr.mxu0 %v1057
        %1287 = vmatpush1.msra.mxu0 %v1056
        %1288 = vmatprep.subr.mxu0 %v1061
        %1289 = vmatpush1.msra.mxu0 %v1060
        %1290 = vmatprep.subr.mxu0 %v1065
        %1291 = vmatpush1.msra.mxu0 %v1064
        %1292 = vmatprep.subr.mxu0 %v1069
        %1293 = vmatpush1.msra.mxu0 %v1068
        %1294 = vmatprep.subr.mxu0 %v1073
        %1295 = vmatpush1.msra.mxu0 %v1072
        %1296 = vmatprep.subr.mxu0 %v1077
        %1297 = vmatpush1.msra.mxu0 %v1076
        %1298 = vmatprep.subr.mxu0 %v1081
        %1299 = vmatpush1.msra.mxu0 %v1080
        %1300 = vmatprep.subr.mxu0 %v1085
        %1301 = vmatpush1.msra.mxu0 %v1084
        %1302 = vmatprep.subr.mxu0 %v1089
        %1303 = vmatpush1.msra.mxu0 %v1088
        %1304 = vmatprep.subr.mxu0 %v1093
        %1305 = vmatpush1.msra.mxu0 %v1092
        %1306 = vmatprep.subr.mxu0 %v1097
        %1307 = vmatpush1.msra.mxu0 %v1096
        %1308 = vmatprep.subr.mxu0 %v1101
        %1309 = vmatpush1.msra.mxu0 %v1100
        %1310 = vmatprep.subr.mxu0 %v1105
        %1311 = vmatpush1.msra.mxu0 %v1104
        %1312 = vmatprep.subr.mxu0 %v1109
        %1313 = vmatpush1.msra.mxu0 %v1108
        %1314 = vmatprep.subr.mxu0 0.0
        %1315 = vmatpush1.msra.mxu0 0.0
        %1316 = vmatprep.subr.mxu0 0.0
        %1317 = vmatpush1.msra.mxu0 0.0
        %1318 = vmatprep.subr.mxu0 0.0
        %1319 = vmatpush1.msra.mxu0 0.0
        %1320 = vmatprep.subr.mxu0 0.0
        %1321 = vmatpush1.msra.mxu0 0.0
        %1322 = vmatprep.subr.mxu0 0.0
        %1323 = vmatpush1.msra.mxu0 0.0
        %1324 = vmatprep.subr.mxu0 0.0
        %1325 = vmatpush1.msra.mxu0 0.0
        %1326 = vmatprep.subr.mxu0 0.0
        %1327 = vmatpush1.msra.mxu0 0.0
        %1328 = vmatprep.subr.mxu0 0.0
        %1329 = vmatpush1.msra.mxu0 0.0
        %1330 = vmatprep.subr.mxu0 0.0
        %1331 = vmatpush1.msra.mxu0 0.0
        %1332 = vmatprep.subr.mxu0 0.0
        %1333 = vmatpush1.msra.mxu0 0.0
        %1334 = vmatprep.subr.mxu0 0.0
        %1335 = vmatpush1.msra.mxu0 0.0
        %1336 = vmatprep.subr.mxu0 0.0
        %1337 = vmatpush1.msra.mxu0 0.0
        %1338 = vmatprep.subr.mxu0 0.0
        %1339 = vmatpush1.msra.mxu0 0.0
        %1340 = vmatprep.subr.mxu0 0.0
        %1341 = vmatpush1.msra.mxu0 0.0
        %1342 = vmatprep.subr.mxu0 0.0
        %1343 = vmatpush1.msra.mxu0 0.0
        %1344 = vmatprep.subr.mxu0 0.0
        %1345 = vmatpush1.msra.mxu0 0.0
        %1346 = vmatprep.mubr.f32.mxu0 0.0
        %1347 = vmatmul.mubr.f32.gmra.mrb[0].mxu0 %v1281
        %v1348 = vpop.f32.mrb[0].mxu0
        %v1349 = vadd.f32 0.0, %v1348
        %v1350 = vpop.f32.mrb[0].mxu0
        %v1351 = vadd.f32 0.0, %v1350
        %1352 = vdwg.mxu0
        %1353 = vmatprep.subr.mxu0 %v1051
        %1354 = vmatpush1.msra.mxu0 %v1050
        %1355 = vmatprep.subr.mxu0 %v1055
        %1356 = vmatpush1.msra.mxu0 %v1054
        %1357 = vmatprep.subr.mxu0 %v1059
        %1358 = vmatpush1.msra.mxu0 %v1058
        %1359 = vmatprep.subr.mxu0 %v1063
        %1360 = vmatpush1.msra.mxu0 %v1062
        %1361 = vmatprep.subr.mxu0 %v1067
        %1362 = vmatpush1.msra.mxu0 %v1066
        %1363 = vmatprep.subr.mxu0 %v1071
        %1364 = vmatpush1.msra.mxu0 %v1070
        %1365 = vmatprep.subr.mxu0 %v1075
        %1366 = vmatpush1.msra.mxu0 %v1074
        %1367 = vmatprep.subr.mxu0 %v1079
        %1368 = vmatpush1.msra.mxu0 %v1078
        %1369 = vmatprep.subr.mxu0 %v1083
        %1370 = vmatpush1.msra.mxu0 %v1082
        %1371 = vmatprep.subr.mxu0 %v1087
        %1372 = vmatpush1.msra.mxu0 %v1086
        %1373 = vmatprep.subr.mxu0 %v1091
        %1374 = vmatpush1.msra.mxu0 %v1090
        %1375 = vmatprep.subr.mxu0 %v1095
        %1376 = vmatpush1.msra.mxu0 %v1094
        %1377 = vmatprep.subr.mxu0 %v1099
        %1378 = vmatpush1.msra.mxu0 %v1098
        %1379 = vmatprep.subr.mxu0 %v1103
        %1380 = vmatpush1.msra.mxu0 %v1102
        %1381 = vmatprep.subr.mxu0 %v1107
        %1382 = vmatpush1.msra.mxu0 %v1106
        %1383 = vmatprep.subr.mxu0 %v1111
        %1384 = vmatpush1.msra.mxu0 %v1110
        %1385 = vmatprep.subr.mxu0 0.0
        %1386 = vmatpush1.msra.mxu0 0.0
        %1387 = vmatprep.subr.mxu0 0.0
        %1388 = vmatpush1.msra.mxu0 0.0
        %1389 = vmatprep.subr.mxu0 0.0
        %1390 = vmatpush1.msra.mxu0 0.0
        %1391 = vmatprep.subr.mxu0 0.0
        %1392 = vmatpush1.msra.mxu0 0.0
        %1393 = vmatprep.subr.mxu0 0.0
        %1394 = vmatpush1.msra.mxu0 0.0
        %1395 = vmatprep.subr.mxu0 0.0
        %1396 = vmatpush1.msra.mxu0 0.0
        %1397 = vmatprep.subr.mxu0 0.0
        %1398 = vmatpush1.msra.mxu0 0.0
        %1399 = vmatprep.subr.mxu0 0.0
        %1400 = vmatpush1.msra.mxu0 0.0
        %1401 = vmatprep.subr.mxu0 0.0
        %1402 = vmatpush1.msra.mxu0 0.0
        %1403 = vmatprep.subr.mxu0 0.0
        %1404 = vmatpush1.msra.mxu0 0.0
        %1405 = vmatprep.subr.mxu0 0.0
        %1406 = vmatpush1.msra.mxu0 0.0
        %1407 = vmatprep.subr.mxu0 0.0
        %1408 = vmatpush1.msra.mxu0 0.0
        %1409 = vmatprep.subr.mxu0 0.0
        %1410 = vmatpush1.msra.mxu0 0.0
        %1411 = vmatprep.subr.mxu0 0.0
        %1412 = vmatpush1.msra.mxu0 0.0
        %1413 = vmatprep.subr.mxu0 0.0
        %1414 = vmatpush1.msra.mxu0 0.0
        %1415 = vmatprep.subr.mxu0 0.0
        %1416 = vmatpush1.msra.mxu0 0.0
        %1417 = vmatprep.mubr.f32.mxu0 0.0
        %1418 = vmatmul.mubr.f32.gmra.mrb[0].mxu0 %v1281
        %v1419 = vpop.f32.mrb[0].mxu0
        %v1420 = vadd.f32 0.0, %v1419
        %v1421 = vpop.f32.mrb[0].mxu0
        %v1422 = vadd.f32 0.0, %v1421
        %1423 = vdwg.mxu0
        %v1428 = vrot.slane %v1349, 7
        %v1429 = vrot.slane %v1351, 7
        %v1430 = vrot.slane %v1420, 7
        %v1431 = vrot.slane %v1422, 7
        %v1436 = vadd.f32 %v1001, %v1428
        %v1437 = vadd.f32 %v1003, %v1429
        %v1438 = vadd.f32 %v1042, %v1430
        %v1439 = vadd.f32 %v1044, %v1431
        %v1440 = vxor.u32 %v1436, 2147483648
        %v1441 = vmul.f32 %v1440, 1.442695
        %v1442 = vpow.pop %v1441
        %v1443 = vadd.f32 %v1442, 1.0
        %v1444 = vrcp.pop %v1443
        %v1445 = vmul.f32 1.0, %v1444
        %v1446 = vxor.u32 %v1437, 2147483648
        %v1447 = vmul.f32 %v1446, 1.442695
        %v1448 = vpow.pop %v1447
        %v1449 = vadd.f32 %v1448, 1.0
        %v1450 = vrcp.pop %v1449
        %v1451 = vmul.f32 1.0, %v1450
        %v1452 = vtanh.pop %v1438
        %v1453 = vxor.u32 %v1439, 2147483648
        %v1454 = vmul.f32 %v1453, 1.442695
        %v1455 = vpow.pop %v1454
        %v1456 = vadd.f32 %v1455, 1.0
        %v1457 = vrcp.pop %v1456
        %v1458 = vmul.f32 1.0, %v1457
        %v1460 = vrot.slane %v1279, 7
        %v1462 = vmul.f32 %v1451, %v1460
        %v1463 = vmul.f32 %v1445, %v1452
        %v1464 = vadd.f32 %v1462, %v1463
        %v1465 = vtanh.pop %v1464
        %v1466 = vmul.f32 %v1458, %v1465
        %v1468 = vrot.slane %v1466, 1
        %1470 = vmatprep.subr.mxu0 %v1049
        %1471 = vmatpush1.msra.mxu0 %v1048
        %1472 = vmatprep.subr.mxu0 %v1053
        %1473 = vmatpush1.msra.mxu0 %v1052
        %1474 = vmatprep.subr.mxu0 %v1057
        %1475 = vmatpush1.msra.mxu0 %v1056
        %1476 = vmatprep.subr.mxu0 %v1061
        %1477 = vmatpush1.msra.mxu0 %v1060
        %1478 = vmatprep.subr.mxu0 %v1065
        %1479 = vmatpush1.msra.mxu0 %v1064
        %1480 = vmatprep.subr.mxu0 %v1069
        %1481 = vmatpush1.msra.mxu0 %v1068
        %1482 = vmatprep.subr.mxu0 %v1073
        %1483 = vmatpush1.msra.mxu0 %v1072
        %1484 = vmatprep.subr.mxu0 %v1077
        %1485 = vmatpush1.msra.mxu0 %v1076
        %1486 = vmatprep.subr.mxu0 %v1081
        %1487 = vmatpush1.msra.mxu0 %v1080
        %1488 = vmatprep.subr.mxu0 %v1085
        %1489 = vmatpush1.msra.mxu0 %v1084
        %1490 = vmatprep.subr.mxu0 %v1089
        %1491 = vmatpush1.msra.mxu0 %v1088
        %1492 = vmatprep.subr.mxu0 %v1093
        %1493 = vmatpush1.msra.mxu0 %v1092
        %1494 = vmatprep.subr.mxu0 %v1097
        %1495 = vmatpush1.msra.mxu0 %v1096
        %1496 = vmatprep.subr.mxu0 %v1101
        %1497 = vmatpush1.msra.mxu0 %v1100
        %1498 = vmatprep.subr.mxu0 %v1105
        %1499 = vmatpush1.msra.mxu0 %v1104
        %1500 = vmatprep.subr.mxu0 %v1109
        %1501 = vmatpush1.msra.mxu0 %v1108
        %1502 = vmatprep.subr.mxu0 0.0
        %1503 = vmatpush1.msra.mxu0 0.0
        %1504 = vmatprep.subr.mxu0 0.0
        %1505 = vmatpush1.msra.mxu0 0.0
        %1506 = vmatprep.subr.mxu0 0.0
        %1507 = vmatpush1.msra.mxu0 0.0
        %1508 = vmatprep.subr.mxu0 0.0
        %1509 = vmatpush1.msra.mxu0 0.0
        %1510 = vmatprep.subr.mxu0 0.0
        %1511 = vmatpush1.msra.mxu0 0.0
        %1512 = vmatprep.subr.mxu0 0.0
        %1513 = vmatpush1.msra.mxu0 0.0
        %1514 = vmatprep.subr.mxu0 0.0
        %1515 = vmatpush1.msra.mxu0 0.0
        %1516 = vmatprep.subr.mxu0 0.0
        %1517 = vmatpush1.msra.mxu0 0.0
        %1518 = vmatprep.subr.mxu0 0.0
        %1519 = vmatpush1.msra.mxu0 0.0
        %1520 = vmatprep.subr.mxu0 0.0
        %1521 = vmatpush1.msra.mxu0 0.0
        %1522 = vmatprep.subr.mxu0 0.0
        %1523 = vmatpush1.msra.mxu0 0.0
        %1524 = vmatprep.subr.mxu0 0.0
        %1525 = vmatpush1.msra.mxu0 0.0
        %1526 = vmatprep.subr.mxu0 0.0
        %1527 = vmatpush1.msra.mxu0 0.0
        %1528 = vmatprep.subr.mxu0 0.0
        %1529 = vmatpush1.msra.mxu0 0.0
        %1530 = vmatprep.subr.mxu0 0.0
        %1531 = vmatpush1.msra.mxu0 0.0
        %1532 = vmatprep.subr.mxu0 0.0
        %1533 = vmatpush1.msra.mxu0 0.0
        %1534 = vmatprep.mubr.f32.mxu0 0.0
        %1535 = vmatmul.mubr.f32.gmra.mrb[0].mxu0 %v1468
        %v1536 = vpop.f32.mrb[0].mxu0
        %v1537 = vadd.f32 0.0, %v1536
        %v1538 = vpop.f32.mrb[0].mxu0
        %v1539 = vadd.f32 0.0, %v1538
        %1540 = vdwg.mxu0
        %1541 = vmatprep.subr.mxu0 %v1051
        %1542 = vmatpush1.msra.mxu0 %v1050
        %1543 = vmatprep.subr.mxu0 %v1055
        %1544 = vmatpush1.msra.mxu0 %v1054
        %1545 = vmatprep.subr.mxu0 %v1059
        %1546 = vmatpush1.msra.mxu0 %v1058
        %1547 = vmatprep.subr.mxu0 %v1063
        %1548 = vmatpush1.msra.mxu0 %v1062
        %1549 = vmatprep.subr.mxu0 %v1067
        %1550 = vmatpush1.msra.mxu0 %v1066
        %1551 = vmatprep.subr.mxu0 %v1071
        %1552 = vmatpush1.msra.mxu0 %v1070
        %1553 = vmatprep.subr.mxu0 %v1075
        %1554 = vmatpush1.msra.mxu0 %v1074
        %1555 = vmatprep.subr.mxu0 %v1079
        %1556 = vmatpush1.msra.mxu0 %v1078
        %1557 = vmatprep.subr.mxu0 %v1083
        %1558 = vmatpush1.msra.mxu0 %v1082
        %1559 = vmatprep.subr.mxu0 %v1087
        %1560 = vmatpush1.msra.mxu0 %v1086
        %1561 = vmatprep.subr.mxu0 %v1091
        %1562 = vmatpush1.msra.mxu0 %v1090
        %1563 = vmatprep.subr.mxu0 %v1095
        %1564 = vmatpush1.msra.mxu0 %v1094
        %1565 = vmatprep.subr.mxu0 %v1099
        %1566 = vmatpush1.msra.mxu0 %v1098
        %1567 = vmatprep.subr.mxu0 %v1103
        %1568 = vmatpush1.msra.mxu0 %v1102
        %1569 = vmatprep.subr.mxu0 %v1107
        %1570 = vmatpush1.msra.mxu0 %v1106
        %1571 = vmatprep.subr.mxu0 %v1111
        %1572 = vmatpush1.msra.mxu0 %v1110
        %1573 = vmatprep.subr.mxu0 0.0
        %1574 = vmatpush1.msra.mxu0 0.0
        %1575 = vmatprep.subr.mxu0 0.0
        %1576 = vmatpush1.msra.mxu0 0.0
        %1577 = vmatprep.subr.mxu0 0.0
        %1578 = vmatpush1.msra.mxu0 0.0
        %1579 = vmatprep.subr.mxu0 0.0
        %1580 = vmatpush1.msra.mxu0 0.0
        %1581 = vmatprep.subr.mxu0 0.0
        %1582 = vmatpush1.msra.mxu0 0.0
        %1583 = vmatprep.subr.mxu0 0.0
        %1584 = vmatpush1.msra.mxu0 0.0
        %1585 = vmatprep.subr.mxu0 0.0
        %1586 = vmatpush1.msra.mxu0 0.0
        %1587 = vmatprep.subr.mxu0 0.0
        %1588 = vmatpush1.msra.mxu0 0.0
        %1589 = vmatprep.subr.mxu0 0.0
        %1590 = vmatpush1.msra.mxu0 0.0
        %1591 = vmatprep.subr.mxu0 0.0
        %1592 = vmatpush1.msra.mxu0 0.0
        %1593 = vmatprep.subr.mxu0 0.0
        %1594 = vmatpush1.msra.mxu0 0.0
        %1595 = vmatprep.subr.mxu0 0.0
        %1596 = vmatpush1.msra.mxu0 0.0
        %1597 = vmatprep.subr.mxu0 0.0
        %1598 = vmatpush1.msra.mxu0 0.0
        %1599 = vmatprep.subr.mxu0 0.0
        %1600 = vmatpush1.msra.mxu0 0.0
        %1601 = vmatprep.subr.mxu0 0.0
        %1602 = vmatpush1.msra.mxu0 0.0
        %1603 = vmatprep.subr.mxu0 0.0
        %1604 = vmatpush1.msra.mxu0 0.0
        %1605 = vmatprep.mubr.f32.mxu0 0.0
        %1606 = vmatmul.mubr.f32.gmra.mrb[0].mxu0 %v1468
        %v1607 = vpop.f32.mrb[0].mxu0
        %v1608 = vadd.f32 0.0, %v1607
        %v1609 = vpop.f32.mrb[0].mxu0
        %v1610 = vadd.f32 0.0, %v1609
        %1611 = vdwg.mxu0
        %v1616 = vrot.slane %v1537, 6
        %v1617 = vrot.slane %v1539, 6
        %v1618 = vrot.slane %v1608, 6
        %v1619 = vrot.slane %v1610, 6
        %v1624 = vadd.f32 %v1001, %v1616
        %v1625 = vadd.f32 %v1003, %v1617
        %v1626 = vadd.f32 %v1042, %v1618
        %v1627 = vadd.f32 %v1044, %v1619
        %v1628 = vxor.u32 %v1624, 2147483648
        %v1629 = vmul.f32 %v1628, 1.442695
        %v1630 = vpow.pop %v1629
        %v1631 = vadd.f32 %v1630, 1.0
        %v1632 = vrcp.pop %v1631
        %v1633 = vmul.f32 1.0, %v1632
        %v1634 = vxor.u32 %v1625, 2147483648
        %v1635 = vmul.f32 %v1634, 1.442695
        %v1636 = vpow.pop %v1635
        %v1637 = vadd.f32 %v1636, 1.0
        %v1638 = vrcp.pop %v1637
        %v1639 = vmul.f32 1.0, %v1638
        %v1640 = vtanh.pop %v1626
        %v1641 = vxor.u32 %v1627, 2147483648
        %v1642 = vmul.f32 %v1641, 1.442695
        %v1643 = vpow.pop %v1642
        %v1644 = vadd.f32 %v1643, 1.0
        %v1645 = vrcp.pop %v1644
        %v1646 = vmul.f32 1.0, %v1645
        %v1648 = vrot.slane %v1464, 7
        %v1650 = vmul.f32 %v1639, %v1648
        %v1651 = vmul.f32 %v1633, %v1640
        %v1652 = vadd.f32 %v1650, %v1651
        %v1653 = vtanh.pop %v1652
        %v1654 = vmul.f32 %v1646, %v1653
        %v1656 = vrot.slane %v1654, 2
        %1658 = vmatprep.subr.mxu0 %v1049
        %1659 = vmatpush1.msra.mxu0 %v1048
        %1660 = vmatprep.subr.mxu0 %v1053
        %1661 = vmatpush1.msra.mxu0 %v1052
        %1662 = vmatprep.subr.mxu0 %v1057
        %1663 = vmatpush1.msra.mxu0 %v1056
        %1664 = vmatprep.subr.mxu0 %v1061
        %1665 = vmatpush1.msra.mxu0 %v1060
        %1666 = vmatprep.subr.mxu0 %v1065
        %1667 = vmatpush1.msra.mxu0 %v1064
        %1668 = vmatprep.subr.mxu0 %v1069
        %1669 = vmatpush1.msra.mxu0 %v1068
        %1670 = vmatprep.subr.mxu0 %v1073
        %1671 = vmatpush1.msra.mxu0 %v1072
        %1672 = vmatprep.subr.mxu0 %v1077
        %1673 = vmatpush1.msra.mxu0 %v1076
        %1674 = vmatprep.subr.mxu0 %v1081
        %1675 = vmatpush1.msra.mxu0 %v1080
        %1676 = vmatprep.subr.mxu0 %v1085
        %1677 = vmatpush1.msra.mxu0 %v1084
        %1678 = vmatprep.subr.mxu0 %v1089
        %1679 = vmatpush1.msra.mxu0 %v1088
        %1680 = vmatprep.subr.mxu0 %v1093
        %1681 = vmatpush1.msra.mxu0 %v1092
        %1682 = vmatprep.subr.mxu0 %v1097
        %1683 = vmatpush1.msra.mxu0 %v1096
        %1684 = vmatprep.subr.mxu0 %v1101
        %1685 = vmatpush1.msra.mxu0 %v1100
        %1686 = vmatprep.subr.mxu0 %v1105
        %1687 = vmatpush1.msra.mxu0 %v1104
        %1688 = vmatprep.subr.mxu0 %v1109
        %1689 = vmatpush1.msra.mxu0 %v1108
        %1690 = vmatprep.subr.mxu0 0.0
        %1691 = vmatpush1.msra.mxu0 0.0
        %1692 = vmatprep.subr.mxu0 0.0
        %1693 = vmatpush1.msra.mxu0 0.0
        %1694 = vmatprep.subr.mxu0 0.0
        %1695 = vmatpush1.msra.mxu0 0.0
        %1696 = vmatprep.subr.mxu0 0.0
        %1697 = vmatpush1.msra.mxu0 0.0
        %1698 = vmatprep.subr.mxu0 0.0
        %1699 = vmatpush1.msra.mxu0 0.0
        %1700 = vmatprep.subr.mxu0 0.0
        %1701 = vmatpush1.msra.mxu0 0.0
        %1702 = vmatprep.subr.mxu0 0.0
        %1703 = vmatpush1.msra.mxu0 0.0
        %1704 = vmatprep.subr.mxu0 0.0
        %1705 = vmatpush1.msra.mxu0 0.0
        %1706 = vmatprep.subr.mxu0 0.0
        %1707 = vmatpush1.msra.mxu0 0.0
        %1708 = vmatprep.subr.mxu0 0.0
        %1709 = vmatpush1.msra.mxu0 0.0
        %1710 = vmatprep.subr.mxu0 0.0
        %1711 = vmatpush1.msra.mxu0 0.0
        %1712 = vmatprep.subr.mxu0 0.0
        %1713 = vmatpush1.msra.mxu0 0.0
        %1714 = vmatprep.subr.mxu0 0.0
        %1715 = vmatpush1.msra.mxu0 0.0
        %1716 = vmatprep.subr.mxu0 0.0
        %1717 = vmatpush1.msra.mxu0 0.0
        %1718 = vmatprep.subr.mxu0 0.0
        %1719 = vmatpush1.msra.mxu0 0.0
        %1720 = vmatprep.subr.mxu0 0.0
        %1721 = vmatpush1.msra.mxu0 0.0
        %1722 = vmatprep.mubr.f32.mxu0 0.0
        %1723 = vmatmul.mubr.f32.gmra.mrb[0].mxu0 %v1656
        %v1724 = vpop.f32.mrb[0].mxu0
        %v1725 = vadd.f32 0.0, %v1724
        %v1726 = vpop.f32.mrb[0].mxu0
        %v1727 = vadd.f32 0.0, %v1726
        %1728 = vdwg.mxu0
        %1729 = vmatprep.subr.mxu0 %v1051
        %1730 = vmatpush1.msra.mxu0 %v1050
        %1731 = vmatprep.subr.mxu0 %v1055
        %1732 = vmatpush1.msra.mxu0 %v1054
        %1733 = vmatprep.subr.mxu0 %v1059
        %1734 = vmatpush1.msra.mxu0 %v1058
        %1735 = vmatprep.subr.mxu0 %v1063
        %1736 = vmatpush1.msra.mxu0 %v1062
        %1737 = vmatprep.subr.mxu0 %v1067
        %1738 = vmatpush1.msra.mxu0 %v1066
        %1739 = vmatprep.subr.mxu0 %v1071
        %1740 = vmatpush1.msra.mxu0 %v1070
        %1741 = vmatprep.subr.mxu0 %v1075
        %1742 = vmatpush1.msra.mxu0 %v1074
        %1743 = vmatprep.subr.mxu0 %v1079
        %1744 = vmatpush1.msra.mxu0 %v1078
        %1745 = vmatprep.subr.mxu0 %v1083
        %1746 = vmatpush1.msra.mxu0 %v1082
        %1747 = vmatprep.subr.mxu0 %v1087
        %1748 = vmatpush1.msra.mxu0 %v1086
        %1749 = vmatprep.subr.mxu0 %v1091
        %1750 = vmatpush1.msra.mxu0 %v1090
        %1751 = vmatprep.subr.mxu0 %v1095
        %1752 = vmatpush1.msra.mxu0 %v1094
        %1753 = vmatprep.subr.mxu0 %v1099
        %1754 = vmatpush1.msra.mxu0 %v1098
        %1755 = vmatprep.subr.mxu0 %v1103
        %1756 = vmatpush1.msra.mxu0 %v1102
        %1757 = vmatprep.subr.mxu0 %v1107
        %1758 = vmatpush1.msra.mxu0 %v1106
        %1759 = vmatprep.subr.mxu0 %v1111
        %1760 = vmatpush1.msra.mxu0 %v1110
        %1761 = vmatprep.subr.mxu0 0.0
        %1762 = vmatpush1.msra.mxu0 0.0
        %1763 = vmatprep.subr.mxu0 0.0
        %1764 = vmatpush1.msra.mxu0 0.0
        %1765 = vmatprep.subr.mxu0 0.0
        %1766 = vmatpush1.msra.mxu0 0.0
        %1767 = vmatprep.subr.mxu0 0.0
        %1768 = vmatpush1.msra.mxu0 0.0
        %1769 = vmatprep.subr.mxu0 0.0
        %1770 = vmatpush1.msra.mxu0 0.0
        %1771 = vmatprep.subr.mxu0 0.0
        %1772 = vmatpush1.msra.mxu0 0.0
        %1773 = vmatprep.subr.mxu0 0.0
        %1774 = vmatpush1.msra.mxu0 0.0
        %1775 = vmatprep.subr.mxu0 0.0
        %1776 = vmatpush1.msra.mxu0 0.0
        %1777 = vmatprep.subr.mxu0 0.0
        %1778 = vmatpush1.msra.mxu0 0.0
        %1779 = vmatprep.subr.mxu0 0.0
        %1780 = vmatpush1.msra.mxu0 0.0
        %1781 = vmatprep.subr.mxu0 0.0
        %1782 = vmatpush1.msra.mxu0 0.0
        %1783 = vmatprep.subr.mxu0 0.0
        %1784 = vmatpush1.msra.mxu0 0.0
        %1785 = vmatprep.subr.mxu0 0.0
        %1786 = vmatpush1.msra.mxu0 0.0
        %1787 = vmatprep.subr.mxu0 0.0
        %1788 = vmatpush1.msra.mxu0 0.0
        %1789 = vmatprep.subr.mxu0 0.0
        %1790 = vmatpush1.msra.mxu0 0.0
        %1791 = vmatprep.subr.mxu0 0.0
        %1792 = vmatpush1.msra.mxu0 0.0
        %1793 = vmatprep.mubr.f32.mxu0 0.0
        %1794 = vmatmul.mubr.f32.gmra.mrb[0].mxu0 %v1656
        %v1795 = vpop.f32.mrb[0].mxu0
        %v1796 = vadd.f32 0.0, %v1795
        %v1797 = vpop.f32.mrb[0].mxu0
        %v1798 = vadd.f32 0.0, %v1797
        %1799 = vdwg.mxu0
        %v1804 = vrot.slane %v1725, 5
        %v1805 = vrot.slane %v1727, 5
        %v1806 = vrot.slane %v1796, 5
        %v1807 = vrot.slane %v1798, 5
        %v1812 = vadd.f32 %v1001, %v1804
        %v1813 = vadd.f32 %v1003, %v1805
        %v1814 = vadd.f32 %v1042, %v1806
        %v1815 = vadd.f32 %v1044, %v1807
        %v1816 = vxor.u32 %v1812, 2147483648
        %v1817 = vmul.f32 %v1816, 1.442695
        %v1818 = vpow.pop %v1817
        %v1819 = vadd.f32 %v1818, 1.0
        %v1820 = vrcp.pop %v1819
        %v1821 = vmul.f32 1.0, %v1820
        %v1822 = vxor.u32 %v1813, 2147483648
        %v1823 = vmul.f32 %v1822, 1.442695
        %v1824 = vpow.pop %v1823
        %v1825 = vadd.f32 %v1824, 1.0
        %v1826 = vrcp.pop %v1825
        %v1827 = vmul.f32 1.0, %v1826
        %v1828 = vtanh.pop %v1814
        %v1829 = vxor.u32 %v1815, 2147483648
        %v1830 = vmul.f32 %v1829, 1.442695
        %v1831 = vpow.pop %v1830
        %v1832 = vadd.f32 %v1831, 1.0
        %v1833 = vrcp.pop %v1832
        %v1834 = vmul.f32 1.0, %v1833
        %v1836 = vrot.slane %v1652, 7
        %v1838 = vmul.f32 %v1827, %v1836
        %v1839 = vmul.f32 %v1821, %v1828
        %v1840 = vadd.f32 %v1838, %v1839
        %v1841 = vtanh.pop %v1840
        %v1842 = vmul.f32 %v1834, %v1841
        %v1843 = vpack.c.bf16 %v1842, %v1842
        %v1844 = vld [vmem:[%s6] sm:$0xf]
        %v1845 = vld [vmem:[%s6 + $0x4] sm:$0xf]
        %v1846 = vld [vmem:[%s6 + $0x8] sm:$0xf]
        %v1847 = vld [vmem:[%s6 + $0xc] sm:$0xf]
        %v1848 = vld [vmem:[%s6 + $0x10] sm:$0xf]
        %v1849 = vld [vmem:[%s6 + $0x14] sm:$0xf]
        %v1850 = vld [vmem:[%s6 + $0x18] sm:$0xf]
        %v1851 = vld [vmem:[%s6 + $0x1c] sm:$0xf]
        %v1852 = vld [vmem:[%s6 + $0x20] sm:$0xf]
        %v1853 = vld [vmem:[%s6 + $0x24] sm:$0xf]
        %v1854 = vld [vmem:[%s6 + $0x28] sm:$0xf]
        %v1855 = vld [vmem:[%s6 + $0x2c] sm:$0xf]
        %v1856 = vld [vmem:[%s6 + $0x30] sm:$0xf]
        %v1857 = vld [vmem:[%s6 + $0x34] sm:$0xf]
        %v1858 = vld [vmem:[%s6 + $0x38] sm:$0xf]
        %v1859 = vld [vmem:[%s6 + $0x3c] sm:$0xf]
        %v1860 = vld [vmem:[%s7] sm:$0x1]
        %v1862 = vshrl.u32 %v1843, 16
        %v1864 = vrot.slane %v1862, 1
        %v1882 = vunpack.c.l.b16 %v1844
        %v1883 = vunpack.c.l.b16 %v1845
        %v1884 = vunpack.c.l.b16 %v1846
        %v1885 = vunpack.c.l.b16 %v1847
        %v1886 = vunpack.c.l.b16 %v1848
        %v1887 = vunpack.c.l.b16 %v1849
        %v1888 = vunpack.c.l.b16 %v1850
        %v1889 = vunpack.c.l.b16 %v1851
        %v1890 = vunpack.c.l.b16 %v1852
        %v1891 = vunpack.c.l.b16 %v1853
        %v1892 = vunpack.c.l.b16 %v1854
        %v1893 = vunpack.c.l.b16 %v1855
        %v1894 = vunpack.c.l.b16 %v1856
        %v1895 = vunpack.c.l.b16 %v1857
        %v1896 = vunpack.c.l.b16 %v1858
        %v1897 = vunpack.c.l.b16 %v1859
        %v1898 = vpack.c.b16 %v1883, %v1882
        %v1899 = vpack.c.b16 %v1885, %v1884
        %v1900 = vpack.c.b16 %v1887, %v1886
        %v1901 = vpack.c.b16 %v1889, %v1888
        %v1902 = vpack.c.b16 %v1891, %v1890
        %v1903 = vpack.c.b16 %v1893, %v1892
        %v1904 = vpack.c.b16 %v1895, %v1894
        %v1905 = vpack.c.b16 %v1897, %v1896
        %1914 = vmatprep.subr.bf16.mxu0 0
        %1915 = vmatpush1.bf16.msra.mxu0 %v1898
        %1916 = vmatprep.subr.bf16.mxu0 0
        %1917 = vmatpush1.bf16.msra.mxu0 %v1899
        %1918 = vmatprep.subr.bf16.mxu0 0
        %1919 = vmatpush1.bf16.msra.mxu0 %v1900
        %1920 = vmatprep.subr.bf16.mxu0 0
        %1921 = vmatpush1.bf16.msra.mxu0 %v1901
        %1922 = vmatprep.subr.bf16.mxu0 0
        %1923 = vmatpush1.bf16.msra.mxu0 %v1902
        %1924 = vmatprep.subr.bf16.mxu0 0
        %1925 = vmatpush1.bf16.msra.mxu0 %v1903
        %1926 = vmatprep.subr.bf16.mxu0 0
        %1927 = vmatpush1.bf16.msra.mxu0 %v1904
        %1928 = vmatprep.subr.bf16.mxu0 0
        %1929 = vmatpush1.bf16.msra.mxu0 %v1905
        %1930 = vmatprep.subr.bf16.mxu0 0
        %1931 = vmatpush1.bf16.msra.mxu0 0
        %1932 = vmatprep.subr.bf16.mxu0 0
        %1933 = vmatpush1.bf16.msra.mxu0 0
        %1934 = vmatprep.subr.bf16.mxu0 0
        %1935 = vmatpush1.bf16.msra.mxu0 0
        %1936 = vmatprep.subr.bf16.mxu0 0
        %1937 = vmatpush1.bf16.msra.mxu0 0
        %1938 = vmatprep.subr.bf16.mxu0 0
        %1939 = vmatpush1.bf16.msra.mxu0 0
        %1940 = vmatprep.subr.bf16.mxu0 0
        %1941 = vmatpush1.bf16.msra.mxu0 0
        %1942 = vmatprep.subr.bf16.mxu0 0
        %1943 = vmatpush1.bf16.msra.mxu0 0
        %1944 = vmatprep.subr.bf16.mxu0 0
        %1945 = vmatpush1.bf16.msra.mxu0 0
        %1946 = vmatprep.mubr.bf16.mxu0 0
        %1947 = vmatmul.mubr.bf16.gmra.mrb[0].mxu0 %v1864
        %v1948 = vpop.f32.mrb[0].mxu0
        %v1949 = vadd.f32 %v1860, %v1948
        %v1950 = vpop.f32.mrb[0].mxu0
        %v1951 = vpop.f32.mrb[0].mxu0
        %v1952 = vpop.f32.mrb[0].mxu0
        %1953 = vdwg.mxu0
        %1954 = vst [vmem:[%s298] sm:$0x1] %v1949
        %s1955 = sand.u32 %s203, 1
        %s1956 = scalar_lea.sflag [#allocation3], %s1955
        %s1957 = sand.u32 %s203, 1
        %s1958 = scalar_lea.vmem [#allocation2], %s1957
        // Predicated region
        $region53: #{detector_forward.1} parent=51 // pred_check
          %p1959 = pneg %p213
        $region54: #{detector_forward.1} parent=51 // pred_check_branch
          %1961 = sbr.rel (%p1959) target = $region56
        $region55: #{detector_forward.1} parent=51 // pred_region
          %s1963 = ssub.s32 16, 16
          %1964 = vsyncadd %s1956, %s1963
          %s1965 = smul.addr %s22, 16
          %s1966 = scalar_lea.hbm %s8, %s1965
          %s1968 = sshll.u32 %s1958, 4
          %s1969 = int_to_ptr.vmem [resolvable:$true] %s1968
          %1971 = dma.vmem_to_hbm [thread:$0]  %s1969, 16, %s1966, %s1956
        $region56: #{detector_forward.1} parent=51 // pred_fallthru
          _
      $region52: #{detector_forward.1} parent=5 // pred_fallthru
        _
      %p1972 = scmp.le.s32.totalorder 2, %s17
      // Predicated region
      $region57: #{detector_forward.1} parent=5 // pred_check
        %p1973 = pneg %p1972
      $region58: #{detector_forward.1} parent=5 // pred_check_branch
        %1975 = sbr.rel (%p1973) target = $region60
      $region59: #{detector_forward.1} parent=5 // pred_region
        %s1976 = ssub.s32 %s17, 2
        // Predicated region
        $region61: #{detector_forward.1} parent=59 // pred_check
          %p1977 = pneg %p219
        $region62: #{detector_forward.1} parent=59 // pred_check_branch
          %1979 = sbr.rel (%p1977) target = $region64
        $region63: #{detector_forward.1} parent=59 // pred_region
          %s1980 = sand.u32 %s204, 1
          %s1981 = scalar_lea.sflag [#allocation3], %s1980
          %s1982 = sand.u32 %s204, 1
          %s1983 = scalar_lea.vmem [#allocation2], %s1982
          %1984 = dma.done %s1981, 16
        $region64: #{detector_forward.1} parent=59 // pred_fallthru
          _
      $region60: #{detector_forward.1} parent=5 // pred_fallthru
        _
    $region6: #{detector_forward.1} parent=1 // loop_footer
      %s21 = sadd.s32 1, %s17
    $region7: #{detector_forward.1} parent=1 // loop_footer_branch
      %16 = sbr.rel target = $region3
    $region8: #{detector_forward.1} parent=1 // loop_exit
      _
    %1985 = vsyncpa [#allocation3], 1
    %s1986 = scalar_lea.sflag [#allocation3], 1
    %1987 = vsyncpa %s1986, 1

</llo_original>
